<compile_context>
chip_gen: v6e
topology: v6e:2x2x1
jax: 0.10.0
libtpu: 0.0.40
codegen_flags: <defaults>
</compile_context>

<pallas_src>
import functools
import math

import jax
import jax.numpy as jnp
from jax import lax
from jax.experimental import pallas as pl
from jax.experimental.pallas import tpu as pltpu


def _round_up(x, m):
    return ((x + m - 1) // m) * m


def _pick_contract_tile(e_pad, max_tile):
    """Largest multiple of 128 <= max_tile that divides e_pad."""
    max_tile = max(128, (max_tile // 128) * 128)
    t = min(e_pad, max_tile)
    while e_pad % t:
        t -= 128
    return t


_HAS_BUFFERED = hasattr(pl, "Buffered")


def _single_buffered_spec(block_shape, index_map):
    """BlockSpec for grid-invariant blocks: request a single VMEM buffer."""
    if _HAS_BUFFERED:
        try:
            return pl.BlockSpec(block_shape, index_map,
                                pipeline_mode=pl.Buffered(1))
        except TypeError:  # older jax without pipeline_mode kwarg
            pass
    return pl.BlockSpec(block_shape, index_map)


# --------------------------------------------------------------------------
# Kernel 1: fused Q/K/V projection (x read once, each row projected once).
# --------------------------------------------------------------------------
def _qkv_proj_kernel(x_ref, wq_ref, bq_ref, wk_ref, bk_ref, wv_ref, bv_ref,
                     q_ref, k_ref, v_ref,
                     q_acc, k_acc, v_acc, *, scale):
    """Grid step (b, s_tile, e_tile) of the fused projection.

    x_ref : (1, ts, ek)     rows of x, contraction-tile of the embed dim
    w*_ref: (ek, E_pad)     projection weight K-tile, (in, out) layout
    b*_ref: (1, E_pad)      projection bias
    q/k/v_ref: (1, ts, E_pad) outputs (written on the last e_tile step)
    *_acc : (ts, E_pad) f32 accumulators over the contraction grid axis
    """
    ke = pl.program_id(2)
    ne = pl.num_programs(2)

    x = x_ref[0]                                                  # (ts, ek)
    qp = jnp.dot(x, wq_ref[...], preferred_element_type=jnp.float32)
    kp = jnp.dot(x, wk_ref[...], preferred_element_type=jnp.float32)
    vp = jnp.dot(x, wv_ref[...], preferred_element_type=jnp.float32)

    @pl.when(ke == 0)
    def _first():
        q_acc[...] = qp
        k_acc[...] = kp
        v_acc[...] = vp

    @pl.when(ke > 0)
    def _rest():
        q_acc[...] += qp
        k_acc[...] += kp
        v_acc[...] += vp

    @pl.when(ke == ne - 1)
    def _finalize():
        # Fold the 1/sqrt(E) softmax scale into Q once, here.
        q_ref[0] = ((q_acc[...] + bq_ref[...]) * scale).astype(q_ref.dtype)
        k_ref[0] = (k_acc[...] + bk_ref[...]).astype(k_ref.dtype)
        v_ref[0] = (v_acc[...] + bv_ref[...]).astype(v_ref.dtype)


# --------------------------------------------------------------------------
# Kernel 2: flash attention (online softmax) on projected Q/K/V.
# --------------------------------------------------------------------------
def _flash_attn_kernel(q_ref, k_ref, v_ref, o_ref,
                       m_scr, l_scr, acc_scr,
                       *, seq_len, block_k, mask_needed):
    """Grid step (b, q_tile, kv_tile).

    q_ref : (1, tq, E_pad)   pre-scaled Q tile
    k_ref : (1, tk, E_pad)   K tile
    v_ref : (1, tk, E_pad)   V tile
    o_ref : (1, tq, E_pad)   output tile (written on the last kv step)
    m_scr, l_scr : (tq, 1) f32 running max / softmax denominator
    acc_scr      : (tq, E_pad) f32 running (unnormalized) output accumulator
    """
    ki = pl.program_id(2)
    nk = pl.num_programs(2)

    @pl.when(ki == 0)
    def _init():
        m_scr[...] = jnp.full(m_scr.shape, -jnp.inf, dtype=jnp.float32)
        l_scr[...] = jnp.zeros(l_scr.shape, dtype=jnp.float32)
        acc_scr[...] = jnp.zeros(acc_scr.shape, dtype=jnp.float32)

    def _update():
        q = q_ref[0]                                              # (tq, E_pad)
        k = k_ref[0]                                              # (tk, E_pad)
        v = v_ref[0]                                              # (tk, E_pad)

        # scores = q @ k^T without an explicit transpose (contract last dims).
        s = lax.dot_general(q, k, (((1,), (1,)), ((), ())),
                            preferred_element_type=jnp.float32)   # (tq, tk)

        if mask_needed:
            # cheap (1, tk) mask instead of a full (tq, tk) iota
            kv_idx = lax.broadcasted_iota(jnp.int32, (1, s.shape[1]), 1)
            s = jnp.where(kv_idx < (seq_len - ki * block_k), s,
                          jnp.float32(-1e30))

        m_prev = m_scr[...]                                       # (tq, 1)
        m_new = jnp.maximum(m_prev, jnp.max(s, axis=-1, keepdims=True))
        alpha = jnp.exp(m_prev - m_new)
        p = jnp.exp(s - m_new)                                    # (tq, tk)
        l_scr[...] = alpha * l_scr[...] + jnp.sum(p, axis=-1, keepdims=True)
        acc_scr[...] = alpha * acc_scr[...] + jnp.dot(
            p.astype(v.dtype), v, preferred_element_type=jnp.float32)
        m_scr[...] = m_new

    if mask_needed:
        # skip fully-padded KV tiles entirely
        pl.when(ki * block_k < seq_len)(_update)
    else:
        _update()

    @pl.when(ki == nk - 1)
    def _finalize():
        inv_l = pl.reciprocal(l_scr[...], approx=True)            # EUP, ~free
        o_ref[0] = (acc_scr[...] * inv_l).astype(o_ref.dtype)


# --------------------------------------------------------------------------
# Wrapper
# --------------------------------------------------------------------------
def self_attention(x, wq, bq, wk, bk, wv, bv, *,
                   tq=128, tk=128, ts=128, proj_k_tile=512,
                   vmem_limit_bytes=None):
    """x: (B, S, E); w*: (E, E) in (in, out) layout; b*: (E,).

    tq/tk: flash attention Q/KV tile sizes (use 256 on v6e/v7x if VMEM allows).
    ts   : projection row-tile size.
    proj_k_tile: contraction (input-dim) tile for the projection GEMMs.
    """
    B, S, E = x.shape
    dtype = x.dtype
    E_pad = _round_up(E, 128)
    S_pad = _round_up(S, math.lcm(tq, tk, ts))

    # Cast weights/biases to the activation dtype (native MXU operands).
    wq, wk, wv = (w.astype(dtype) for w in (wq, wk, wv))
    bq, bk, bv = (b.astype(dtype) for b in (bq, bk, bv))

    # Zero-pad only when needed (padded E columns stay exactly zero through the
    # projections; padded KV rows are masked in the attention kernel).
    if (S_pad, E_pad) != (S, E):
        x_p = jnp.pad(x, ((0, 0), (0, S_pad - S), (0, E_pad - E)))
    else:
        x_p = x

    if E_pad != E:
        def pad_w(w):
            return jnp.pad(w, ((0, E_pad - E), (0, E_pad - E)))

        def pad_b(b):
            return jnp.pad(b, ((0, E_pad - E),)).reshape(1, E_pad)
    else:
        def pad_w(w):
            return w

        def pad_b(b):
            return b.reshape(1, E_pad)

    wq_p, wk_p, wv_p = pad_w(wq), pad_w(wk), pad_w(wv)
    bq_p, bk_p, bv_p = pad_b(bq), pad_b(bk), pad_b(bv)

    def compiler_params():
        kwargs = dict(dimension_semantics=("parallel", "parallel", "arbitrary"))
        if vmem_limit_bytes is not None:
            kwargs["vmem_limit_bytes"] = vmem_limit_bytes
        return pltpu.CompilerParams(**kwargs)

    # ---------------- 1) fused Q/K/V projection ----------------
    ek = _pick_contract_tile(E_pad, proj_k_tile)
    n_s, n_e = S_pad // ts, E_pad // ek
    scale = 1.0 / (E ** 0.5)          # real embed dim, matching x.size(-1)**0.5

    if n_e == 1:
        # grid-invariant weight block -> single buffer (no wasted 2nd copy)
        weight_spec = _single_buffered_spec((ek, E_pad), lambda b, si, ke: (0, 0))
    else:
        # K-tiled weights: small (ek, E_pad) blocks, default double-buffering
        weight_spec = pl.BlockSpec((ek, E_pad), lambda b, si, ke: (ke, 0))
    bias_spec = _single_buffered_spec((1, E_pad), lambda b, si, ke: (0, 0))

    qkv_shape = jax.ShapeDtypeStruct((B, S_pad, E_pad), dtype)
    q_p, k_p, v_p = pl.pallas_call(
        functools.partial(_qkv_proj_kernel, scale=scale),
        out_shape=(qkv_shape, qkv_shape, qkv_shape),
        grid_spec=pltpu.PrefetchScalarGridSpec(
            num_scalar_prefetch=0,
            grid=(B, n_s, n_e),
            in_specs=[
                pl.BlockSpec((1, ts, ek), lambda b, si, ke: (b, si, ke)),  # x
                weight_spec, bias_spec,                                    # query
                weight_spec, bias_spec,                                    # key
                weight_spec, bias_spec,                                    # value
            ],
            out_specs=[
                pl.BlockSpec((1, ts, E_pad), lambda b, si, ke: (b, si, 0)),
                pl.BlockSpec((1, ts, E_pad), lambda b, si, ke: (b, si, 0)),
                pl.BlockSpec((1, ts, E_pad), lambda b, si, ke: (b, si, 0)),
            ],
            scratch_shapes=[pltpu.VMEM((ts, E_pad), jnp.float32)] * 3,
        ),
        compiler_params=compiler_params(),
    )(x_p, wq_p, bq_p, wk_p, bk_p, wv_p, bv_p)

    # ---------------- 2) flash attention ----------------
    n_q, n_k = S_pad // tq, S_pad // tk
    mask_needed = S_pad != S

    out = pl.pallas_call(
        functools.partial(_flash_attn_kernel, seq_len=S, block_k=tk,
                          mask_needed=mask_needed),
        out_shape=jax.ShapeDtypeStruct((B, S_pad, E_pad), dtype),
        grid_spec=pltpu.PrefetchScalarGridSpec(
            num_scalar_prefetch=0,
            grid=(B, n_q, n_k),
            in_specs=[
                pl.BlockSpec((1, tq, E_pad), lambda b, qi, ki: (b, qi, 0)),  # Q
                pl.BlockSpec((1, tk, E_pad), lambda b, qi, ki: (b, ki, 0)),  # K
                pl.BlockSpec((1, tk, E_pad), lambda b, qi, ki: (b, ki, 0)),  # V
            ],
            out_specs=pl.BlockSpec((1, tq, E_pad), lambda b, qi, ki: (b, qi, 0)),
            scratch_shapes=[
                pltpu.VMEM((tq, 1), jnp.float32),       # running max m
                pltpu.VMEM((tq, 1), jnp.float32),       # running denom l
                pltpu.VMEM((tq, E_pad), jnp.float32),   # output accumulator
            ],
        ),
        compiler_params=compiler_params(),
    )(q_p, k_p, v_p)

    if (S_pad, E_pad) != (S, E):
        out = out[:, :S, :E]
    return out


def _reference(x, wq, bq, wk, bk, wv, bv):
    q = x @ wq + bq
    k = x @ wk + bk
    v = x @ wv + bv
    scores = jnp.einsum("bqe,bke->bqk", q, k) / (x.shape[-1] ** 0.5)
    w = jax.nn.softmax(scores, axis=-1)
    return jnp.einsum("bqk,bke->bqe", w, v)


if __name__ == "__main__":
    B, S, E = 2, 8, 32
    key = jax.random.PRNGKey(0)
    kx, kq, kbq, kk, kbk, kvw, kbv = jax.random.split(key, 7)

    x = jax.random.normal(kx, (B, S, E), dtype=jnp.float32)
    # nn.Linear-like uniform(-1/sqrt(E), 1/sqrt(E)) init, stored as (in, out).
    bound = 1.0 / (E ** 0.5)
    wq = jax.random.uniform(kq, (E, E), jnp.float32, -bound, bound)
    bq = jax.random.uniform(kbq, (E,), jnp.float32, -bound, bound)
    wk = jax.random.uniform(kk, (E, E), jnp.float32, -bound, bound)
    bk = jax.random.uniform(kbk, (E,), jnp.float32, -bound, bound)
    wv = jax.random.uniform(kvw, (E, E), jnp.float32, -bound, bound)
    bv = jax.random.uniform(kbv, (E,), jnp.float32, -bound, bound)

    # ---- f32 check ----
    out = self_attention(x, wq, bq, wk, bk, wv, bv)
    out = jax.block_until_ready(out)
    ref = _reference(x, wq, bq, wk, bk, wv, bv)
    assert out.shape == (B, S, E)
    # tolerance loosened slightly: pl.reciprocal(approx=True) has ~1e-4 rel err.
    assert jnp.allclose(out, ref, atol=2e-3, rtol=2e-3), "f32 mismatch vs reference"

    # ---- bf16 mixed-precision path (native MXU operands) ----
    x16 = x.astype(jnp.bfloat16)
    out16 = self_attention(x16, wq, bq, wk, bk, wv, bv)
    out16 = jax.block_until_ready(out16)
    ref16 = _reference(x16.astype(jnp.float32),
                       wq.astype(jnp.bfloat16).astype(jnp.float32),
                       bq.astype(jnp.bfloat16).astype(jnp.float32),
                       wk.astype(jnp.bfloat16).astype(jnp.float32),
                       bk.astype(jnp.bfloat16).astype(jnp.float32),
                       wv.astype(jnp.bfloat16).astype(jnp.float32),
                       bv.astype(jnp.bfloat16).astype(jnp.float32))
    assert out16.shape == (B, S, E)
    assert jnp.allclose(out16.astype(jnp.float32), ref16, atol=5e-2, rtol=5e-2), \
        "bf16 mismatch vs reference"

    print("KERNEL_OK")
</pallas_src>

<mosaic_0001>
module attributes {stable_mosaic.version = 11 : i64} {
  func.func @_qkv_proj_kernel(%arg0: i32, %arg1: i32, %arg2: i32, %arg3: memref<1x128x128xf32, #tpu.memory_space<vmem>>, %arg4: memref<128x128xf32, #tpu.memory_space<vmem>>, %arg5: memref<1x128xf32, #tpu.memory_space<vmem>>, %arg6: memref<128x128xf32, #tpu.memory_space<vmem>>, %arg7: memref<1x128xf32, #tpu.memory_space<vmem>>, %arg8: memref<128x128xf32, #tpu.memory_space<vmem>>, %arg9: memref<1x128xf32, #tpu.memory_space<vmem>>, %arg10: memref<1x128x128xf32, #tpu.memory_space<vmem>>, %arg11: memref<1x128x128xf32, #tpu.memory_space<vmem>>, %arg12: memref<1x128x128xf32, #tpu.memory_space<vmem>>, %arg13: memref<128x128xf32, #tpu.memory_space<vmem>>, %arg14: memref<128x128xf32, #tpu.memory_space<vmem>>, %arg15: memref<128x128xf32, #tpu.memory_space<vmem>>) attributes {dimension_semantics = [#tpu.dimension_semantics<parallel>, #tpu.dimension_semantics<parallel>, #tpu.dimension_semantics<arbitrary>], iteration_bounds = array<i64: 2, 1, 1>, scalar_prefetch = 0 : i64, scratch_operands = 3 : i64, tpu.core_type = #tpu.core_type<tc>, window_params = [{transform_indices = @transform_0, window_bounds = array<i64: 1, 128, 128>}, {pipeline_mode = #tpu.pipeline_mode<synchronous>, transform_indices = @transform_1, window_bounds = array<i64: 128, 128>}, {pipeline_mode = #tpu.pipeline_mode<synchronous>, transform_indices = @transform_2, window_bounds = array<i64: 1, 128>}, {pipeline_mode = #tpu.pipeline_mode<synchronous>, transform_indices = @transform_3, window_bounds = array<i64: 128, 128>}, {pipeline_mode = #tpu.pipeline_mode<synchronous>, transform_indices = @transform_4, window_bounds = array<i64: 1, 128>}, {pipeline_mode = #tpu.pipeline_mode<synchronous>, transform_indices = @transform_5, window_bounds = array<i64: 128, 128>}, {pipeline_mode = #tpu.pipeline_mode<synchronous>, transform_indices = @transform_6, window_bounds = array<i64: 1, 128>}, {transform_indices = @transform_7, window_bounds = array<i64: 1, 128, 128>}, {transform_indices = @transform_8, window_bounds = array<i64: 1, 128, 128>}, {transform_indices = @transform_9, window_bounds = array<i64: 1, 128, 128>}]} {
    %c0 = arith.constant 0 : index
    %c0_0 = arith.constant 0 : index
    %c0_1 = arith.constant 0 : index
    %0 = vector.load %arg3[%c0, %c0_0, %c0_1] : memref<1x128x128xf32, #tpu.memory_space<vmem>>, vector<1x128x128xf32>
    %1 = vector.shape_cast %0 : vector<1x128x128xf32> to vector<128x128xf32>
    %c0_2 = arith.constant 0 : index
    %c0_3 = arith.constant 0 : index
    %2 = vector.load %arg4[%c0_2, %c0_3] : memref<128x128xf32, #tpu.memory_space<vmem>>, vector<128x128xf32>
    %cst = arith.constant dense<0.000000e+00> : vector<128x128xf32>
    %3 = tpu.matmul %1, %2, %cst {dimension_numbers = #tpu.dot_dimension_numbers<[1], [0], [0], [1], [0, 0, 1, 1], [], []>} : vector<128x128xf32>, vector<128x128xf32>, vector<128x128xf32> -> vector<128x128xf32>
    %c0_4 = arith.constant 0 : index
    %c0_5 = arith.constant 0 : index
    %4 = vector.load %arg6[%c0_4, %c0_5] : memref<128x128xf32, #tpu.memory_space<vmem>>, vector<128x128xf32>
    %cst_6 = arith.constant dense<0.000000e+00> : vector<128x128xf32>
    %5 = tpu.matmul %1, %4, %cst_6 {dimension_numbers = #tpu.dot_dimension_numbers<[1], [0], [0], [1], [0, 0, 1, 1], [], []>} : vector<128x128xf32>, vector<128x128xf32>, vector<128x128xf32> -> vector<128x128xf32>
    %c0_7 = arith.constant 0 : index
    %c0_8 = arith.constant 0 : index
    %6 = vector.load %arg8[%c0_7, %c0_8] : memref<128x128xf32, #tpu.memory_space<vmem>>, vector<128x128xf32>
    %cst_9 = arith.constant dense<0.000000e+00> : vector<128x128xf32>
    %7 = tpu.matmul %1, %6, %cst_9 {dimension_numbers = #tpu.dot_dimension_numbers<[1], [0], [0], [1], [0, 0, 1, 1], [], []>} : vector<128x128xf32>, vector<128x128xf32>, vector<128x128xf32> -> vector<128x128xf32>
    %c0_i32 = arith.constant 0 : i32
    %8 = arith.cmpi eq, %arg2, %c0_i32 : i32
    %9 = arith.extui %8 : i1 to i32
    %c0_i32_10 = arith.constant 0 : i32
    %10 = arith.cmpi ne, %9, %c0_i32_10 : i32
    scf.if %10 {
      %c0_15 = arith.constant 0 : index
      %c0_16 = arith.constant 0 : index
      %17 = vector.load %arg13[%c0_15, %c0_16] : memref<128x128xf32, #tpu.memory_space<vmem>>, vector<128x128xf32>
      tpu.vector_store %arg13[%c0_15, %c0_16], %3 {strides = array<i32>} : memref<128x128xf32, #tpu.memory_space<vmem>>, vector<128x128xf32>,
      %c0_17 = arith.constant 0 : index
      %c0_18 = arith.constant 0 : index
      %18 = vector.load %arg14[%c0_17, %c0_18] : memref<128x128xf32, #tpu.memory_space<vmem>>, vector<128x128xf32>
      tpu.vector_store %arg14[%c0_17, %c0_18], %5 {strides = array<i32>} : memref<128x128xf32, #tpu.memory_space<vmem>>, vector<128x128xf32>,
      %c0_19 = arith.constant 0 : index
      %c0_20 = arith.constant 0 : index
      %19 = vector.load %arg15[%c0_19, %c0_20] : memref<128x128xf32, #tpu.memory_space<vmem>>, vector<128x128xf32>
      tpu.vector_store %arg15[%c0_19, %c0_20], %7 {strides = array<i32>} : memref<128x128xf32, #tpu.memory_space<vmem>>, vector<128x128xf32>,
    } else {
    }
    %c0_i32_11 = arith.constant 0 : i32
    %11 = arith.cmpi sgt, %arg2, %c0_i32_11 : i32
    %12 = arith.extui %11 : i1 to i32
    %c0_i32_12 = arith.constant 0 : i32
    %13 = arith.cmpi ne, %12, %c0_i32_12 : i32
    scf.if %13 {
      %c0_15 = arith.constant 0 : index
      %c0_16 = arith.constant 0 : index
      %17 = vector.load %arg13[%c0_15, %c0_16] : memref<128x128xf32, #tpu.memory_space<vmem>>, vector<128x128xf32>
      %18 = arith.addf %17, %3 : vector<128x128xf32>
      %c0_17 = arith.constant 0 : index
      %c0_18 = arith.constant 0 : index
      %19 = vector.load %arg13[%c0_17, %c0_18] : memref<128x128xf32, #tpu.memory_space<vmem>>, vector<128x128xf32>
      tpu.vector_store %arg13[%c0_17, %c0_18], %18 {strides = array<i32>} : memref<128x128xf32, #tpu.memory_space<vmem>>, vector<128x128xf32>,
      %c0_19 = arith.constant 0 : index
      %c0_20 = arith.constant 0 : index
      %20 = vector.load %arg14[%c0_19, %c0_20] : memref<128x128xf32, #tpu.memory_space<vmem>>, vector<128x128xf32>
      %21 = arith.addf %20, %5 : vector<128x128xf32>
      %c0_21 = arith.constant 0 : index
      %c0_22 = arith.constant 0 : index
      %22 = vector.load %arg14[%c0_21, %c0_22] : memref<128x128xf32, #tpu.memory_space<vmem>>, vector<128x128xf32>
      tpu.vector_store %arg14[%c0_21, %c0_22], %21 {strides = array<i32>} : memref<128x128xf32, #tpu.memory_space<vmem>>, vector<128x128xf32>,
      %c0_23 = arith.constant 0 : index
      %c0_24 = arith.constant 0 : index
      %23 = vector.load %arg15[%c0_23, %c0_24] : memref<128x128xf32, #tpu.memory_space<vmem>>, vector<128x128xf32>
      %24 = arith.addf %23, %7 : vector<128x128xf32>
      %c0_25 = arith.constant 0 : index
      %c0_26 = arith.constant 0 : index
      %25 = vector.load %arg15[%c0_25, %c0_26] : memref<128x128xf32, #tpu.memory_space<vmem>>, vector<128x128xf32>
      tpu.vector_store %arg15[%c0_25, %c0_26], %24 {strides = array<i32>} : memref<128x128xf32, #tpu.memory_space<vmem>>, vector<128x128xf32>,
    } else {
    }
    %c0_i32_13 = arith.constant 0 : i32
    %14 = arith.cmpi eq, %arg2, %c0_i32_13 : i32
    %15 = arith.extui %14 : i1 to i32
    %c0_i32_14 = arith.constant 0 : i32
    %16 = arith.cmpi ne, %15, %c0_i32_14 : i32
    scf.if %16 {
      %c0_15 = arith.constant 0 : index
      %c0_16 = arith.constant 0 : index
      %17 = vector.load %arg13[%c0_15, %c0_16] : memref<128x128xf32, #tpu.memory_space<vmem>>, vector<128x128xf32>
      %c0_17 = arith.constant 0 : index
      %c0_18 = arith.constant 0 : index
      %18 = vector.load %arg5[%c0_17, %c0_18] : memref<1x128xf32, #tpu.memory_space<vmem>>, vector<1x128xf32>
      %19 = vector.broadcast %18 : vector<1x128xf32> to vector<128x128xf32>
      %20 = arith.addf %17, %19 : vector<128x128xf32>
      %cst_19 = arith.constant 0.176776692 : f32
      %21 = vector.broadcast %cst_19 : f32 to vector<128x128xf32>
      %22 = arith.mulf %20, %21 : vector<128x128xf32>
      %c0_20 = arith.constant 0 : index
      %c0_21 = arith.constant 0 : index
      %c0_22 = arith.constant 0 : index
      %23 = vector.load %arg10[%c0_20, %c0_21, %c0_22] : memref<1x128x128xf32, #tpu.memory_space<vmem>>, vector<1x128x128xf32>
      %24 = vector.shape_cast %23 : vector<1x128x128xf32> to vector<128x128xf32>
      %25 = vector.shape_cast %22 : vector<128x128xf32> to vector<1x128x128xf32>
      tpu.vector_store %arg10[%c0_20, %c0_21, %c0_22], %25 {strides = array<i32>} : memref<1x128x128xf32, #tpu.memory_space<vmem>>, vector<1x128x128xf32>,
      %c0_23 = arith.constant 0 : index
      %c0_24 = arith.constant 0 : index
      %26 = vector.load %arg14[%c0_23, %c0_24] : memref<128x128xf32, #tpu.memory_space<vmem>>, vector<128x128xf32>
      %c0_25 = arith.constant 0 : index
      %c0_26 = arith.constant 0 : index
      %27 = vector.load %arg7[%c0_25, %c0_26] : memref<1x128xf32, #tpu.memory_space<vmem>>, vector<1x128xf32>
      %28 = vector.broadcast %27 : vector<1x128xf32> to vector<128x128xf32>
      %29 = arith.addf %26, %28 : vector<128x128xf32>
      %c0_27 = arith.constant 0 : index
      %c0_28 = arith.constant 0 : index
      %c0_29 = arith.constant 0 : index
      %30 = vector.load %arg11[%c0_27, %c0_28, %c0_29] : memref<1x128x128xf32, #tpu.memory_space<vmem>>, vector<1x128x128xf32>
      %31 = vector.shape_cast %30 : vector<1x128x128xf32> to vector<128x128xf32>
      %32 = vector.shape_cast %29 : vector<128x128xf32> to vector<1x128x128xf32>
      tpu.vector_store %arg11[%c0_27, %c0_28, %c0_29], %32 {strides = array<i32>} : memref<1x128x128xf32, #tpu.memory_space<vmem>>, vector<1x128x128xf32>,
      %c0_30 = arith.constant 0 : index
      %c0_31 = arith.constant 0 : index
      %33 = vector.load %arg15[%c0_30, %c0_31] : memref<128x128xf32, #tpu.memory_space<vmem>>, vector<128x128xf32>
      %c0_32 = arith.constant 0 : index
      %c0_33 = arith.constant 0 : index
      %34 = vector.load %arg9[%c0_32, %c0_33] : memref<1x128xf32, #tpu.memory_space<vmem>>, vector<1x128xf32>
      %35 = vector.broadcast %34 : vector<1x128xf32> to vector<128x128xf32>
      %36 = arith.addf %33, %35 : vector<128x128xf32>
      %c0_34 = arith.constant 0 : index
      %c0_35 = arith.constant 0 : index
      %c0_36 = arith.constant 0 : index
      %37 = vector.load %arg12[%c0_34, %c0_35, %c0_36] : memref<1x128x128xf32, #tpu.memory_space<vmem>>, vector<1x128x128xf32>
      %38 = vector.shape_cast %37 : vector<1x128x128xf32> to vector<128x128xf32>
      %39 = vector.shape_cast %36 : vector<128x128xf32> to vector<1x128x128xf32>
      tpu.vector_store %arg12[%c0_34, %c0_35, %c0_36], %39 {strides = array<i32>} : memref<1x128x128xf32, #tpu.memory_space<vmem>>, vector<1x128x128xf32>,
    } else {
    }
    return
  }
  func.func @transform_0(%arg0: i32, %arg1: i32, %arg2: i32) -> (i32, i32, i32) {
    %c0_i32 = arith.constant 0 : i32
    return %arg0, %arg1, %arg2 : i32, i32, i32
  }
  func.func @transform_1(%arg0: i32, %arg1: i32, %arg2: i32) -> (i32, i32) {
    %c0_i32 = arith.constant 0 : i32
    %c0_i32_0 = arith.constant 0 : i32
    %c0_i32_1 = arith.constant 0 : i32
    return %c0_i32, %c0_i32_0 : i32, i32
  }
  func.func @transform_2(%arg0: i32, %arg1: i32, %arg2: i32) -> (i32, i32) {
    %c0_i32 = arith.constant 0 : i32
    %c0_i32_0 = arith.constant 0 : i32
    %c0_i32_1 = arith.constant 0 : i32
    return %c0_i32, %c0_i32_0 : i32, i32
  }
  func.func @transform_3(%arg0: i32, %arg1: i32, %arg2: i32) -> (i32, i32) {
    %c0_i32 = arith.constant 0 : i32
    %c0_i32_0 = arith.constant 0 : i32
    %c0_i32_1 = arith.constant 0 : i32
    return %c0_i32, %c0_i32_0 : i32, i32
  }
  func.func @transform_4(%arg0: i32, %arg1: i32, %arg2: i32) -> (i32, i32) {
    %c0_i32 = arith.constant 0 : i32
    %c0_i32_0 = arith.constant 0 : i32
    %c0_i32_1 = arith.constant 0 : i32
    return %c0_i32, %c0_i32_0 : i32, i32
  }
  func.func @transform_5(%arg0: i32, %arg1: i32, %arg2: i32) -> (i32, i32) {
    %c0_i32 = arith.constant 0 : i32
    %c0_i32_0 = arith.constant 0 : i32
    %c0_i32_1 = arith.constant 0 : i32
    return %c0_i32, %c0_i32_0 : i32, i32
  }
  func.func @transform_6(%arg0: i32, %arg1: i32, %arg2: i32) -> (i32, i32) {
    %c0_i32 = arith.constant 0 : i32
    %c0_i32_0 = arith.constant 0 : i32
    %c0_i32_1 = arith.constant 0 : i32
    return %c0_i32, %c0_i32_0 : i32, i32
  }
  func.func @transform_7(%arg0: i32, %arg1: i32, %arg2: i32) -> (i32, i32, i32) {
    %c0_i32 = arith.constant 0 : i32
    %c0_i32_0 = arith.constant 0 : i32
    return %arg0, %arg1, %c0_i32 : i32, i32, i32
  }
  func.func @transform_8(%arg0: i32, %arg1: i32, %arg2: i32) -> (i32, i32, i32) {
    %c0_i32 = arith.constant 0 : i32
    %c0_i32_0 = arith.constant 0 : i32
    return %arg0, %arg1, %c0_i32 : i32, i32, i32
  }
  func.func @transform_9(%arg0: i32, %arg1: i32, %arg2: i32) -> (i32, i32, i32) {
    %c0_i32 = arith.constant 0 : i32
    %c0_i32_0 = arith.constant 0 : i32
    return %arg0, %arg1, %c0_i32 : i32, i32, i32
  }
}

</mosaic_0001>

<llo_original>
// kernel: tpu_custom_call.1
$region0: #{tpu_custom_call.1}
  #allocation0 [shape = 'u32[]', space=smem, size = 0x4, offset = 0x4, fixed_abs, tag = 'smem constant byte address 0x4 - core index']
  #allocation1 [shape = 'u32[144,128]{1,0:T(1,128)}', space=vmem, size = 0x12000, scoped, tag = 'internal scratch']
  #allocation2 [shape = 'f32[128,128]{1,0:T(8,128)}', space=vmem, size = 0x10000, scoped, tag = 'scratch operand']
  #allocation3 [shape = 'f32[128,128]{1,0:T(8,128)}', space=vmem, size = 0x10000, scoped, tag = 'scratch operand']
  #allocation4 [shape = 'f32[128,128]{1,0:T(8,128)}', space=vmem, size = 0x10000, scoped, tag = 'scratch operand']
  %s0 = inlined_call_operand.hbm [shape: f32[2,128,128], index: 0, kind: input, shape index: {}]
  %s1 = inlined_call_operand.hbm [shape: f32[128,128], index: 1, kind: input, shape index: {}]
  %s2 = inlined_call_operand.vmem [shape: f32[1,128], index: 2, kind: input, shape index: {}]
  %s3 = inlined_call_operand.hbm [shape: f32[128,128], index: 3, kind: input, shape index: {}]
  %s4 = inlined_call_operand.vmem [shape: f32[1,128], index: 4, kind: input, shape index: {}]
  %s5 = inlined_call_operand.hbm [shape: f32[128,128], index: 5, kind: input, shape index: {}]
  %s6 = inlined_call_operand.vmem [shape: f32[1,128], index: 6, kind: input, shape index: {}]
  %s7 = inlined_call_operand.hbm [shape: f32[2,128,128], index: 7, kind: output, shape index: {0}]
  %s8 = inlined_call_operand.hbm [shape: f32[2,128,128], index: 8, kind: output, shape index: {1}]
  %s9 = inlined_call_operand.hbm [shape: f32[2,128,128], index: 9, kind: output, shape index: {2}]
  %10 = xla_tuple %s7, %s8, %s9
  %s11 = sld [smem:[#allocation0]]
  $region105: #{tpu_custom_call.1} parent=0
    _
  %s13 = ssub.s32 1, %s11
  %s14 = scalar_select 0, %s13, %s11
  $region1: #{tpu_custom_call.1} parent=0
    #allocation5 [shape = 'u8[131072]{0}', space=vmem, size = 0x20000, scoped, tag = 'input window, operand 0']
    #allocation6 [shape = 's32[2]{0}', space=sflag, size = 0x8, scoped, tag = 'scoped memory for tpu_custom_call.1']
    #allocation7 [shape = 's32[2]{0}', space=sflag, size = 0x8, scoped, tag = 'scoped memory for tpu_custom_call.1']
    #allocation8 [shape = 'u8[65536]{0}', space=vmem, size = 0x10000, scoped, tag = 'input window, operand 1, single buffered']
    #allocation9 [shape = 's32[1]{0}', space=sflag, size = 0x4, scoped, tag = 'scoped memory for tpu_custom_call.1']
    #allocation10 [shape = 'u8[65536]{0}', space=vmem, size = 0x10000, scoped, tag = 'input window, operand 3, single buffered']
    #allocation11 [shape = 'u8[65536]{0}', space=vmem, size = 0x10000, scoped, tag = 'input window, operand 5, single buffered']
    #allocation12 [shape = 's32[1]{0}', space=sflag, size = 0x4, scoped, tag = 'scoped memory for tpu_custom_call.1']
    #allocation13 [shape = 'u8[131072]{0}', space=vmem, size = 0x20000, scoped, tag = 'output window, operand 0']
    #allocation14 [shape = 'u8[131072]{0}', space=vmem, size = 0x20000, scoped, tag = 'output window, operand 1']
    #allocation15 [shape = 's32[2]{0}', space=sflag, size = 0x8, scoped, tag = 'scoped memory for tpu_custom_call.1']
    #allocation16 [shape = 'u8[131072]{0}', space=vmem, size = 0x20000, scoped, tag = 'output window, operand 2']
    %15 = vsyncpa [#allocation6], 0
    %s16 = scalar_lea.sflag [#allocation6], 1
    %17 = vsyncpa %s16, 0
    %18 = vsyncpa [#allocation9], 0
    %19 = vsyncpa [#allocation12], 0
    %20 = vsyncpa [#allocation7], 0
    %s21 = scalar_lea.sflag [#allocation7], 1
    %22 = vsyncpa %s21, 0
    %23 = vsyncpa [#allocation15], 0
    %s24 = scalar_lea.sflag [#allocation15], 1
    %25 = vsyncpa %s24, 0
    loop: start=0, step=1, limit=4
    $region2: #{tpu_custom_call.1} parent=1 // loop_pre_header
      _
    $region3: #{tpu_custom_call.1} parent=1 // loop_header
      %s27 = sphi 0, %s31
      %p28 = scmp.ge.s32.totalorder %s27, 4
      %s34 = sphi 0, %s53
      %s35 = sphi 0, %s49
      %s36 = sphi 0, %s45
      %s37 = sphi 0, %s34
      %s38 = sphi 0, %s35
      %s39 = sphi 0, %s36
      %s40 = sphi 0, %s37
      %s41 = sphi 0, %s38
      %s42 = sphi 0, %s39
      %s60 = sphi 0, %s62
      %s63 = sphi 0, %s60
      %s64 = sphi 0, %s63
      %s80 = sphi 0, %s64
      %s84 = sphi 0, %s84
      %s86 = sphi 0, %s84
      %s87 = sphi 0, %s86
      %s101 = sphi 0, %s87
      %s105 = sphi 0, %s105
      %s107 = sphi 0, %s105
      %s108 = sphi 0, %s107
      %s122 = sphi 0, %s108
      %s126 = sphi 0, %s126
      %s128 = sphi 0, %s126
      %s129 = sphi 0, %s128
      %s143 = sphi 0, %s129
      %s147 = sphi 0, %s147
      %s149 = sphi 0, %s147
      %s150 = sphi 0, %s149
      %s164 = sphi 0, %s150
      %s168 = sphi 0, %s168
      %s170 = sphi 0, %s168
      %s171 = sphi 0, %s170
      %s185 = sphi 0, %s171
      %s189 = sphi 0, %s189
      %s191 = sphi 0, %s189
      %s192 = sphi 0, %s191
      %s206 = sphi 0, %s192
      %s214 = sphi 0, %s216
      %s217 = sphi 0, %s214
      %s218 = sphi 0, %s217
      %s234 = sphi 0, %s218
      %s242 = sphi 0, %s244
      %s245 = sphi 0, %s242
      %s246 = sphi 0, %s245
      %s262 = sphi 0, %s246
      %s270 = sphi 0, %s272
      %s273 = sphi 0, %s270
      %s274 = sphi 0, %s273
      %s290 = sphi 0, %s274
    $region4: #{tpu_custom_call.1} parent=1 // loop_header_branch
      %30 = sbr.rel (%p28) target = $region8
    $region5: #{tpu_custom_call.1} parent=1 // loop_body
      %s32 = ssub.s32 %s27, 1
      %s33 = ssub.s32 %s27, 2
      %s43 = sadd.s32 1, %s36
      %p44 = scmp.ge.s32.totalorder %s43, 1
      %s45 = scalar_select %p44, 0, %s43
      %s46 = sadd.s32 1, %s35
      %s47 = scalar_select %p44, %s46, %s35
      %p48 = scmp.ge.s32.totalorder %s47, 1
      %s49 = scalar_select %p48, 0, %s47
      %s50 = sadd.s32 1, %s34
      %s51 = scalar_select %p48, %s50, %s34
      %p52 = scmp.ge.s32.totalorder %s51, 2
      %s53 = scalar_select %p52, 0, %s51
      %s54 = ssub.s32 %s34, %s53
      %s55 = ssub.s32 %s35, %s49
      %s56 = sor.u32 %s54, %s55
      %s57 = ssub.s32 %s36, %s45
      %s58 = sor.u32 %s56, %s57
      %p59 = scmp.eq.s32.totalorder %s58, 0
      %s61 = sadd.s32 %s60, 1
      %s62 = scalar_select %p59, %s60, %s61
      %p65 = pneg %p59
      %p66 = scmp.eq.s32.totalorder %s27, 1
      %p67 = por %p65, %p66
      %p68 = scmp.ne.s32.totalorder %s60, %s63
      %p69 = scmp.eq.s32.totalorder %s27, 0
      %p70 = por %p68, %p69
      %p71 = scmp.ne.s32.totalorder %s60, %s63
      %p72 = scmp.eq.s32.totalorder %s32, 1
      %p73 = por %p71, %p72
      %p74 = scmp.ne.s32.totalorder %s63, %s64
      %p75 = scmp.eq.s32.totalorder %s32, 0
      %p76 = por %p74, %p75
      %p77 = scmp.ne.s32.totalorder %s63, %s64
      %p78 = scmp.eq.s32.totalorder %s33, 1
      %p79 = por %p77, %p78
      %p81 = scmp.ne.s32.totalorder %s64, %s80
      %p82 = scmp.eq.s32.totalorder %s33, 0
      %p83 = por %p81, %p82
      %s85 = sadd.s32 %s84, 1
      %p88 = scmp.eq.s32.totalorder %s27, 1
      %p89 = scmp.ne.s32.totalorder %s84, %s86
      %p90 = scmp.eq.s32.totalorder %s27, 0
      %p91 = por %p89, %p90
      %p92 = scmp.ne.s32.totalorder %s84, %s86
      %p93 = scmp.eq.s32.totalorder %s32, 1
      %p94 = por %p92, %p93
      %p95 = scmp.ne.s32.totalorder %s86, %s87
      %p96 = scmp.eq.s32.totalorder %s32, 0
      %p97 = por %p95, %p96
      %p98 = scmp.ne.s32.totalorder %s86, %s87
      %p99 = scmp.eq.s32.totalorder %s33, 1
      %p100 = por %p98, %p99
      %p102 = scmp.ne.s32.totalorder %s87, %s101
      %p103 = scmp.eq.s32.totalorder %s33, 0
      %p104 = por %p102, %p103
      %s106 = sadd.s32 %s105, 1
      %p109 = scmp.eq.s32.totalorder %s27, 1
      %p110 = scmp.ne.s32.totalorder %s105, %s107
      %p111 = scmp.eq.s32.totalorder %s27, 0
      %p112 = por %p110, %p111
      %p113 = scmp.ne.s32.totalorder %s105, %s107
      %p114 = scmp.eq.s32.totalorder %s32, 1
      %p115 = por %p113, %p114
      %p116 = scmp.ne.s32.totalorder %s107, %s108
      %p117 = scmp.eq.s32.totalorder %s32, 0
      %p118 = por %p116, %p117
      %p119 = scmp.ne.s32.totalorder %s107, %s108
      %p120 = scmp.eq.s32.totalorder %s33, 1
      %p121 = por %p119, %p120
      %p123 = scmp.ne.s32.totalorder %s108, %s122
      %p124 = scmp.eq.s32.totalorder %s33, 0
      %p125 = por %p123, %p124
      %s127 = sadd.s32 %s126, 1
      %p130 = scmp.eq.s32.totalorder %s27, 1
      %p131 = scmp.ne.s32.totalorder %s126, %s128
      %p132 = scmp.eq.s32.totalorder %s27, 0
      %p133 = por %p131, %p132
      %p134 = scmp.ne.s32.totalorder %s126, %s128
      %p135 = scmp.eq.s32.totalorder %s32, 1
      %p136 = por %p134, %p135
      %p137 = scmp.ne.s32.totalorder %s128, %s129
      %p138 = scmp.eq.s32.totalorder %s32, 0
      %p139 = por %p137, %p138
      %p140 = scmp.ne.s32.totalorder %s128, %s129
      %p141 = scmp.eq.s32.totalorder %s33, 1
      %p142 = por %p140, %p141
      %p144 = scmp.ne.s32.totalorder %s129, %s143
      %p145 = scmp.eq.s32.totalorder %s33, 0
      %p146 = por %p144, %p145
      %s148 = sadd.s32 %s147, 1
      %p151 = scmp.eq.s32.totalorder %s27, 1
      %p152 = scmp.ne.s32.totalorder %s147, %s149
      %p153 = scmp.eq.s32.totalorder %s27, 0
      %p154 = por %p152, %p153
      %p155 = scmp.ne.s32.totalorder %s147, %s149
      %p156 = scmp.eq.s32.totalorder %s32, 1
      %p157 = por %p155, %p156
      %p158 = scmp.ne.s32.totalorder %s149, %s150
      %p159 = scmp.eq.s32.totalorder %s32, 0
      %p160 = por %p158, %p159
      %p161 = scmp.ne.s32.totalorder %s149, %s150
      %p162 = scmp.eq.s32.totalorder %s33, 1
      %p163 = por %p161, %p162
      %p165 = scmp.ne.s32.totalorder %s150, %s164
      %p166 = scmp.eq.s32.totalorder %s33, 0
      %p167 = por %p165, %p166
      %s169 = sadd.s32 %s168, 1
      %p172 = scmp.eq.s32.totalorder %s27, 1
      %p173 = scmp.ne.s32.totalorder %s168, %s170
      %p174 = scmp.eq.s32.totalorder %s27, 0
      %p175 = por %p173, %p174
      %p176 = scmp.ne.s32.totalorder %s168, %s170
      %p177 = scmp.eq.s32.totalorder %s32, 1
      %p178 = por %p176, %p177
      %p179 = scmp.ne.s32.totalorder %s170, %s171
      %p180 = scmp.eq.s32.totalorder %s32, 0
      %p181 = por %p179, %p180
      %p182 = scmp.ne.s32.totalorder %s170, %s171
      %p183 = scmp.eq.s32.totalorder %s33, 1
      %p184 = por %p182, %p183
      %p186 = scmp.ne.s32.totalorder %s171, %s185
      %p187 = scmp.eq.s32.totalorder %s33, 0
      %p188 = por %p186, %p187
      %s190 = sadd.s32 %s189, 1
      %p193 = scmp.eq.s32.totalorder %s27, 1
      %p194 = scmp.ne.s32.totalorder %s189, %s191
      %p195 = scmp.eq.s32.totalorder %s27, 0
      %p196 = por %p194, %p195
      %p197 = scmp.ne.s32.totalorder %s189, %s191
      %p198 = scmp.eq.s32.totalorder %s32, 1
      %p199 = por %p197, %p198
      %p200 = scmp.ne.s32.totalorder %s191, %s192
      %p201 = scmp.eq.s32.totalorder %s32, 0
      %p202 = por %p200, %p201
      %p203 = scmp.ne.s32.totalorder %s191, %s192
      %p204 = scmp.eq.s32.totalorder %s33, 1
      %p205 = por %p203, %p204
      %p207 = scmp.ne.s32.totalorder %s192, %s206
      %p208 = scmp.eq.s32.totalorder %s33, 0
      %p209 = por %p207, %p208
      %s210 = ssub.s32 %s34, %s53
      %s211 = ssub.s32 %s35, %s49
      %s212 = sor.u32 %s210, %s211
      %p213 = scmp.eq.s32.totalorder %s212, 0
      %s215 = sadd.s32 %s214, 1
      %s216 = scalar_select %p213, %s214, %s215
      %p219 = pneg %p213
      %p220 = scmp.eq.s32.totalorder %s27, 1
      %p221 = por %p219, %p220
      %p222 = scmp.ne.s32.totalorder %s214, %s217
      %p223 = scmp.eq.s32.totalorder %s27, 0
      %p224 = por %p222, %p223
      %p225 = scmp.ne.s32.totalorder %s214, %s217
      %p226 = scmp.eq.s32.totalorder %s32, 1
      %p227 = por %p225, %p226
      %p228 = scmp.ne.s32.totalorder %s217, %s218
      %p229 = scmp.eq.s32.totalorder %s32, 0
      %p230 = por %p228, %p229
      %p231 = scmp.ne.s32.totalorder %s217, %s218
      %p232 = scmp.eq.s32.totalorder %s33, 1
      %p233 = por %p231, %p232
      %p235 = scmp.ne.s32.totalorder %s218, %s234
      %p236 = scmp.eq.s32.totalorder %s33, 0
      %p237 = por %p235, %p236
      %s238 = ssub.s32 %s34, %s53
      %s239 = ssub.s32 %s35, %s49
      %s240 = sor.u32 %s238, %s239
      %p241 = scmp.eq.s32.totalorder %s240, 0
      %s243 = sadd.s32 %s242, 1
      %s244 = scalar_select %p241, %s242, %s243
      %p247 = pneg %p241
      %p248 = scmp.eq.s32.totalorder %s27, 1
      %p249 = por %p247, %p248
      %p250 = scmp.ne.s32.totalorder %s242, %s245
      %p251 = scmp.eq.s32.totalorder %s27, 0
      %p252 = por %p250, %p251
      %p253 = scmp.ne.s32.totalorder %s242, %s245
      %p254 = scmp.eq.s32.totalorder %s32, 1
      %p255 = por %p253, %p254
      %p256 = scmp.ne.s32.totalorder %s245, %s246
      %p257 = scmp.eq.s32.totalorder %s32, 0
      %p258 = por %p256, %p257
      %p259 = scmp.ne.s32.totalorder %s245, %s246
      %p260 = scmp.eq.s32.totalorder %s33, 1
      %p261 = por %p259, %p260
      %p263 = scmp.ne.s32.totalorder %s246, %s262
      %p264 = scmp.eq.s32.totalorder %s33, 0
      %p265 = por %p263, %p264
      %s266 = ssub.s32 %s34, %s53
      %s267 = ssub.s32 %s35, %s49
      %s268 = sor.u32 %s266, %s267
      %p269 = scmp.eq.s32.totalorder %s268, 0
      %s271 = sadd.s32 %s270, 1
      %s272 = scalar_select %p269, %s270, %s271
      %p275 = pneg %p269
      %p276 = scmp.eq.s32.totalorder %s27, 1
      %p277 = por %p275, %p276
      %p278 = scmp.ne.s32.totalorder %s270, %s273
      %p279 = scmp.eq.s32.totalorder %s27, 0
      %p280 = por %p278, %p279
      %p281 = scmp.ne.s32.totalorder %s270, %s273
      %p282 = scmp.eq.s32.totalorder %s32, 1
      %p283 = por %p281, %p282
      %p284 = scmp.ne.s32.totalorder %s273, %s274
      %p285 = scmp.eq.s32.totalorder %s32, 0
      %p286 = por %p284, %p285
      %p287 = scmp.ne.s32.totalorder %s273, %s274
      %p288 = scmp.eq.s32.totalorder %s33, 1
      %p289 = por %p287, %p288
      %p291 = scmp.ne.s32.totalorder %s274, %s290
      %p292 = scmp.eq.s32.totalorder %s33, 0
      %p293 = por %p291, %p292
      %p294 = scmp.le.s32.totalorder 1, %s27
      %p295 = scmp.lt.s32.totalorder %s27, 3
      %p296 = pnand %p294, %p295
      %p297 = pneg %p296
      // Predicated region
      $region9: #{tpu_custom_call.1} parent=5 // pred_check
        _
      $region10: #{tpu_custom_call.1} parent=5 // pred_check_branch
        %299 = sbr.rel (%p296) target = $region12
      $region11: #{tpu_custom_call.1} parent=5 // pred_region
        %s300 = ssub.s32 %s27, 1
        // Predicated region
        $region13: #{tpu_custom_call.1} parent=11 // pred_check
          %p301 = pneg %p97
        $region14: #{tpu_custom_call.1} parent=11 // pred_check_branch
          %303 = sbr.rel (%p301) target = $region16
        $region15: #{tpu_custom_call.1} parent=11 // pred_region
          %s305 = ssub.s32 2048, 2048
          %306 = vsyncadd [#allocation9], %s305
          %s307 = sshll.u32 [#allocation8], 4
          %s308 = int_to_ptr.vmem [resolvable:$true] %s307
          %313 = dma.hbm_to_vmem [thread:$0]  %s1, 2048, %s308, [#allocation9], 128, 128, 8
        $region16: #{tpu_custom_call.1} parent=11 // pred_fallthru
          _
        // Predicated region
        $region17: #{tpu_custom_call.1} parent=11 // pred_check
          %p314 = pneg %p118
        $region18: #{tpu_custom_call.1} parent=11 // pred_check_branch
          %316 = sbr.rel (%p314) target = $region20
        $region19: #{tpu_custom_call.1} parent=11 // pred_region
          _
        $region20: #{tpu_custom_call.1} parent=11 // pred_fallthru
          _
        // Predicated region
        $region21: #{tpu_custom_call.1} parent=11 // pred_check
          %p317 = pneg %p139
        $region22: #{tpu_custom_call.1} parent=11 // pred_check_branch
          %319 = sbr.rel (%p317) target = $region24
        $region23: #{tpu_custom_call.1} parent=11 // pred_region
          %s321 = ssub.s32 2048, 2048
          %322 = vsyncadd [#allocation9], %s321
          %s323 = sshll.u32 [#allocation10], 4
          %s324 = int_to_ptr.vmem [resolvable:$true] %s323
          %329 = dma.hbm_to_vmem [thread:$0]  %s3, 2048, %s324, [#allocation9], 128, 128, 8
        $region24: #{tpu_custom_call.1} parent=11 // pred_fallthru
          _
        // Predicated region
        $region25: #{tpu_custom_call.1} parent=11 // pred_check
          %p330 = pneg %p160
        $region26: #{tpu_custom_call.1} parent=11 // pred_check_branch
          %332 = sbr.rel (%p330) target = $region28
        $region27: #{tpu_custom_call.1} parent=11 // pred_region
          _
        $region28: #{tpu_custom_call.1} parent=11 // pred_fallthru
          _
        // Predicated region
        $region29: #{tpu_custom_call.1} parent=11 // pred_check
          %p333 = pneg %p181
        $region30: #{tpu_custom_call.1} parent=11 // pred_check_branch
          %335 = sbr.rel (%p333) target = $region32
        $region31: #{tpu_custom_call.1} parent=11 // pred_region
          %s337 = ssub.s32 2048, 2048
          %338 = vsyncadd [#allocation12], %s337
          %s339 = sshll.u32 [#allocation11], 4
          %s340 = int_to_ptr.vmem [resolvable:$true] %s339
          %345 = dma.hbm_to_vmem [thread:$0]  %s5, 2048, %s340, [#allocation12], 128, 128, 8
        $region32: #{tpu_custom_call.1} parent=11 // pred_fallthru
          _
        // Predicated region
        $region33: #{tpu_custom_call.1} parent=11 // pred_check
          %p346 = pneg %p202
        $region34: #{tpu_custom_call.1} parent=11 // pred_check_branch
          %348 = sbr.rel (%p346) target = $region36
        $region35: #{tpu_custom_call.1} parent=11 // pred_region
          _
        $region36: #{tpu_custom_call.1} parent=11 // pred_fallthru
          _
      $region12: #{tpu_custom_call.1} parent=5 // pred_fallthru
        _
      %p349 = scmp.lt.s32.totalorder %s27, 2
      // Predicated region
      $region37: #{tpu_custom_call.1} parent=5 // pred_check
        %p350 = pneg %p349
      $region38: #{tpu_custom_call.1} parent=5 // pred_check_branch
        %352 = sbr.rel (%p350) target = $region40
      $region39: #{tpu_custom_call.1} parent=5 // pred_region
        // Predicated region
        $region41: #{tpu_custom_call.1} parent=39 // pred_check
          %p353 = pneg %p70
        $region42: #{tpu_custom_call.1} parent=39 // pred_check_branch
          %355 = sbr.rel (%p353) target = $region44
        $region43: #{tpu_custom_call.1} parent=39 // pred_region
          %s356 = sand.u32 %s60, 1
          %s357 = scalar_lea.sflag [#allocation6], %s356
          %s358 = sand.u32 %s60, 1
          %s359 = smul.addr %s358, 128
          %s360 = scalar_lea.vmem [#allocation5], %s359
          %s361 = smul.u32 16, %s35
          %s363 = ssub.s32 2048, 2048
          %364 = vsyncadd %s357, %s363
          %s365 = sadd.s32 %s36, %s361
          %s366 = smul.addr %s34, 16
          %s367 = sadd.s32 %s365, %s366
          %s368 = smul.addr %s367, 128
          %s369 = scalar_lea.hbm %s0, %s368
          %s370 = sshll.u32 %s360, 4
          %s371 = int_to_ptr.vmem [resolvable:$true] %s370
          %376 = dma.hbm_to_vmem [thread:$0]  %s369, 2048, %s371, %s357, 128, 128, 8
        $region44: #{tpu_custom_call.1} parent=39 // pred_fallthru
          _
      $region40: #{tpu_custom_call.1} parent=5 // pred_fallthru
        _
      %p377 = scmp.le.s32.totalorder 1, %s27
      %p378 = scmp.lt.s32.totalorder %s27, 3
      %p379 = pnand %p377, %p378
      %p380 = pneg %p379
      // Predicated region
      $region45: #{tpu_custom_call.1} parent=5 // pred_check
        _
      $region46: #{tpu_custom_call.1} parent=5 // pred_check_branch
        %382 = sbr.rel (%p379) target = $region48
      $region47: #{tpu_custom_call.1} parent=5 // pred_region
        %s383 = ssub.s32 %s27, 1
        %s384 = sand.u32 %s63, 1
        %s385 = scalar_lea.sflag [#allocation6], %s384
        %s386 = sand.u32 %s63, 1
        %s387 = smul.addr %s386, 128
        %s388 = scalar_lea.vmem [#allocation5], %s387
        // Predicated region
        $region49: #{tpu_custom_call.1} parent=47 // pred_check
          %p389 = pneg %p76
        $region50: #{tpu_custom_call.1} parent=47 // pred_check_branch
          %391 = sbr.rel (%p389) target = $region52
        $region51: #{tpu_custom_call.1} parent=47 // pred_region
          %392 = dma.done %s385, 2048
        $region52: #{tpu_custom_call.1} parent=47 // pred_fallthru
          _
        // Predicated region
        $region53: #{tpu_custom_call.1} parent=47 // pred_check
          %p393 = pneg %p97
        $region54: #{tpu_custom_call.1} parent=47 // pred_check_branch
          %395 = sbr.rel (%p393) target = $region56
        $region55: #{tpu_custom_call.1} parent=47 // pred_region
          %396 = dma.done [#allocation9], 2048
        $region56: #{tpu_custom_call.1} parent=47 // pred_fallthru
          _
        // Predicated region
        $region57: #{tpu_custom_call.1} parent=47 // pred_check
          %p397 = pneg %p139
        $region58: #{tpu_custom_call.1} parent=47 // pred_check_branch
          %399 = sbr.rel (%p397) target = $region60
        $region59: #{tpu_custom_call.1} parent=47 // pred_region
          %400 = dma.done [#allocation9], 2048
        $region60: #{tpu_custom_call.1} parent=47 // pred_fallthru
          _
        // Predicated region
        $region61: #{tpu_custom_call.1} parent=47 // pred_check
          %p401 = pneg %p181
        $region62: #{tpu_custom_call.1} parent=47 // pred_check_branch
          %403 = sbr.rel (%p401) target = $region64
        $region63: #{tpu_custom_call.1} parent=47 // pred_region
          %404 = dma.done [#allocation12], 2048
        $region64: #{tpu_custom_call.1} parent=47 // pred_fallthru
          _
        %s405 = sand.u32 %s63, 1
        %s406 = scalar_lea.sflag [#allocation6], %s405
        %s407 = sand.u32 %s63, 1
        %s408 = smul.addr %s407, 128
        %s409 = scalar_lea.vmem [#allocation5], %s408
        %p410 = pneg %p76
        %p411 = pneg %p73
        %p412 = pneg %p97
        %p413 = pneg %p94
        %p414 = pneg %p118
        %p415 = pneg %p115
        %p416 = pneg %p139
        %p417 = pneg %p136
        %p418 = pneg %p160
        %p419 = pneg %p157
        %p420 = pneg %p181
        %p421 = pneg %p178
        %p422 = pneg %p202
        %p423 = pneg %p199
        %p424 = pneg %p230
        %p425 = pneg %p227
        %s426 = sand.u32 %s217, 1
        %s427 = scalar_lea.sflag [#allocation7], %s426
        %s428 = sand.u32 %s217, 1
        %s429 = smul.addr %s428, 128
        %s430 = scalar_lea.vmem [#allocation13], %s429
        %p431 = pneg %p258
        %p432 = pneg %p255
        %s433 = sand.u32 %s32, 1
        %s434 = scalar_lea.sflag [#allocation15], %s433
        %s435 = sand.u32 %s245, 1
        %s436 = smul.addr %s435, 128
        %s437 = scalar_lea.vmem [#allocation14], %s436
        %p438 = pneg %p286
        %p439 = pneg %p283
        %s440 = sand.u32 %s32, 1
        %s441 = scalar_lea.sflag [#allocation15], %s440
        %s442 = sand.u32 %s273, 1
        %s443 = smul.addr %s442, 128
        %s444 = scalar_lea.vmem [#allocation16], %s443
        %s445 = smul.u32 16, %s38
        %s446 = smul.u32 16, %s38
        %s447 = smul.u32 16, %s38
        %s448 = smul.u32 16, %s38
        %v449 = vld [vmem:[%s388] sm:$0xff]
        %v450 = vld [vmem:[%s388 + $0x8] sm:$0xff]
        %v451 = vld [vmem:[%s388 + $0x10] sm:$0xff]
        %v452 = vld [vmem:[%s388 + $0x18] sm:$0xff]
        %v453 = vld [vmem:[%s388 + $0x20] sm:$0xff]
        %v454 = vld [vmem:[%s388 + $0x28] sm:$0xff]
        %v455 = vld [vmem:[%s388 + $0x30] sm:$0xff]
        %v456 = vld [vmem:[%s388 + $0x38] sm:$0xff]
        %v457 = vld [vmem:[%s388 + $0x40] sm:$0xff]
        %v458 = vld [vmem:[%s388 + $0x48] sm:$0xff]
        %v459 = vld [vmem:[%s388 + $0x50] sm:$0xff]
        %v460 = vld [vmem:[%s388 + $0x58] sm:$0xff]
        %v461 = vld [vmem:[%s388 + $0x60] sm:$0xff]
        %v462 = vld [vmem:[%s388 + $0x68] sm:$0xff]
        %v463 = vld [vmem:[%s388 + $0x70] sm:$0xff]
        %v464 = vld [vmem:[%s388 + $0x78] sm:$0xff]
        %v465 = vld [vmem:[#allocation8] sm:$0xff]
        %v466 = vld [vmem:[#allocation8 + $0x8] sm:$0xff]
        %v467 = vld [vmem:[#allocation8 + $0x10] sm:$0xff]
        %v468 = vld [vmem:[#allocation8 + $0x18] sm:$0xff]
        %v469 = vld [vmem:[#allocation8 + $0x20] sm:$0xff]
        %v470 = vld [vmem:[#allocation8 + $0x28] sm:$0xff]
        %v471 = vld [vmem:[#allocation8 + $0x30] sm:$0xff]
        %v472 = vld [vmem:[#allocation8 + $0x38] sm:$0xff]
        %v473 = vld [vmem:[#allocation8 + $0x40] sm:$0xff]
        %v474 = vld [vmem:[#allocation8 + $0x48] sm:$0xff]
        %v475 = vld [vmem:[#allocation8 + $0x50] sm:$0xff]
        %v476 = vld [vmem:[#allocation8 + $0x58] sm:$0xff]
        %v477 = vld [vmem:[#allocation8 + $0x60] sm:$0xff]
        %v478 = vld [vmem:[#allocation8 + $0x68] sm:$0xff]
        %v479 = vld [vmem:[#allocation8 + $0x70] sm:$0xff]
        %v480 = vld [vmem:[#allocation8 + $0x78] sm:$0xff]
        %481 = vmatprep.subr.mxu0 0.0
        %482 = vmatpush1.msra.mxu0 %v480
        %483 = vmatprep.subr.mxu0 0.0
        %484 = vmatpush1.msra.mxu0 %v479
        %485 = vmatprep.subr.mxu0 0.0
        %486 = vmatpush1.msra.mxu0 %v478
        %487 = vmatprep.subr.mxu0 0.0
        %488 = vmatpush1.msra.mxu0 %v477
        %489 = vmatprep.subr.mxu0 0.0
        %490 = vmatpush1.msra.mxu0 %v476
        %491 = vmatprep.subr.mxu0 0.0
        %492 = vmatpush1.msra.mxu0 %v475
        %493 = vmatprep.subr.mxu0 0.0
        %494 = vmatpush1.msra.mxu0 %v474
        %495 = vmatprep.subr.mxu0 0.0
        %496 = vmatpush1.msra.mxu0 %v473
        %497 = vmatprep.subr.mxu0 0.0
        %498 = vmatpush1.msra.mxu0 %v472
        %499 = vmatprep.subr.mxu0 0.0
        %500 = vmatpush1.msra.mxu0 %v471
        %501 = vmatprep.subr.mxu0 0.0
        %502 = vmatpush1.msra.mxu0 %v470
        %503 = vmatprep.subr.mxu0 0.0
        %504 = vmatpush1.msra.mxu0 %v469
        %505 = vmatprep.subr.mxu0 0.0
        %506 = vmatpush1.msra.mxu0 %v468
        %507 = vmatprep.subr.mxu0 0.0
        %508 = vmatpush1.msra.mxu0 %v467
        %509 = vmatprep.subr.mxu0 0.0
        %510 = vmatpush1.msra.mxu0 %v466
        %511 = vmatprep.subr.mxu0 0.0
        %512 = vmatpush1.msra.mxu0 %v465
        %513 = vmatprep.subr.mxu0 0.0
        %514 = vmatpush2.msra.mxu0 0.0
        %515 = vmatprep.subr.mxu0 0.0
        %516 = vmatpush2.msra.mxu0 0.0
        %517 = vmatprep.subr.mxu0 0.0
        %518 = vmatpush2.msra.mxu0 0.0
        %519 = vmatprep.subr.mxu0 0.0
        %520 = vmatpush2.msra.mxu0 0.0
        %521 = vmatprep.subr.mxu0 0.0
        %522 = vmatpush2.msra.mxu0 0.0
        %523 = vmatprep.subr.mxu0 0.0
        %524 = vmatpush2.msra.mxu0 0.0
        %525 = vmatprep.subr.mxu0 0.0
        %526 = vmatpush2.msra.mxu0 0.0
        %527 = vmatprep.subr.mxu0 0.0
        %528 = vmatpush2.msra.mxu0 0.0
        %529 = vmatprep.subr.mxu0 0.0
        %530 = vmatpush2.msra.mxu0 0.0
        %531 = vmatprep.subr.mxu0 0.0
        %532 = vmatpush2.msra.mxu0 0.0
        %533 = vmatprep.subr.mxu0 0.0
        %534 = vmatpush2.msra.mxu0 0.0
        %535 = vmatprep.subr.mxu0 0.0
        %536 = vmatpush2.msra.mxu0 0.0
        %537 = vmatprep.subr.mxu0 0.0
        %538 = vmatpush2.msra.mxu0 0.0
        %539 = vmatprep.subr.mxu0 0.0
        %540 = vmatpush2.msra.mxu0 0.0
        %541 = vmatprep.subr.mxu0 0.0
        %542 = vmatpush2.msra.mxu0 0.0
        %543 = vmatprep.subr.mxu0 0.0
        %544 = vmatpush2.msra.mxu0 0.0
        %545 = vmatprep.mubr.f32.mxu0 0.0
        %546 = vmatmul.mubr.f32.gmra.mxu0 %v449
        %v547 = vpop.f32.mrf.mxu0
        %v548 = vadd.f32 0.0, %v547
        %v549 = vpop.f32.mrf.mxu0
        %550 = vmatprep.mubr.f32.mxu0 0.0
        %551 = vmatmul.mubr.f32.gmra.mxu0 %v450
        %v552 = vpop.f32.mrf.mxu0
        %v553 = vadd.f32 0.0, %v552
        %v554 = vpop.f32.mrf.mxu0
        %555 = vmatprep.mubr.f32.mxu0 0.0
        %556 = vmatmul.mubr.f32.gmra.mxu0 %v451
        %v557 = vpop.f32.mrf.mxu0
        %v558 = vadd.f32 0.0, %v557
        %v559 = vpop.f32.mrf.mxu0
        %560 = vmatprep.mubr.f32.mxu0 0.0
        %561 = vmatmul.mubr.f32.gmra.mxu0 %v452
        %v562 = vpop.f32.mrf.mxu0
        %v563 = vadd.f32 0.0, %v562
        %v564 = vpop.f32.mrf.mxu0
        %565 = vmatprep.mubr.f32.mxu0 0.0
        %566 = vmatmul.mubr.f32.gmra.mxu0 %v453
        %v567 = vpop.f32.mrf.mxu0
        %v568 = vadd.f32 0.0, %v567
        %v569 = vpop.f32.mrf.mxu0
        %570 = vmatprep.mubr.f32.mxu0 0.0
        %571 = vmatmul.mubr.f32.gmra.mxu0 %v454
        %v572 = vpop.f32.mrf.mxu0
        %v573 = vadd.f32 0.0, %v572
        %v574 = vpop.f32.mrf.mxu0
        %575 = vmatprep.mubr.f32.mxu0 0.0
        %576 = vmatmul.mubr.f32.gmra.mxu0 %v455
        %v577 = vpop.f32.mrf.mxu0
        %v578 = vadd.f32 0.0, %v577
        %v579 = vpop.f32.mrf.mxu0
        %580 = vmatprep.mubr.f32.mxu0 0.0
        %581 = vmatmul.mubr.f32.gmra.mxu0 %v456
        %v582 = vpop.f32.mrf.mxu0
        %v583 = vadd.f32 0.0, %v582
        %v584 = vpop.f32.mrf.mxu0
        %585 = vmatprep.mubr.f32.mxu0 0.0
        %586 = vmatmul.mubr.f32.gmra.mxu0 %v457
        %v587 = vpop.f32.mrf.mxu0
        %v588 = vadd.f32 0.0, %v587
        %v589 = vpop.f32.mrf.mxu0
        %590 = vmatprep.mubr.f32.mxu0 0.0
        %591 = vmatmul.mubr.f32.gmra.mxu0 %v458
        %v592 = vpop.f32.mrf.mxu0
        %v593 = vadd.f32 0.0, %v592
        %v594 = vpop.f32.mrf.mxu0
        %595 = vmatprep.mubr.f32.mxu0 0.0
        %596 = vmatmul.mubr.f32.gmra.mxu0 %v459
        %v597 = vpop.f32.mrf.mxu0
        %v598 = vadd.f32 0.0, %v597
        %v599 = vpop.f32.mrf.mxu0
        %600 = vmatprep.mubr.f32.mxu0 0.0
        %601 = vmatmul.mubr.f32.gmra.mxu0 %v460
        %v602 = vpop.f32.mrf.mxu0
        %v603 = vadd.f32 0.0, %v602
        %v604 = vpop.f32.mrf.mxu0
        %605 = vmatprep.mubr.f32.mxu0 0.0
        %606 = vmatmul.mubr.f32.gmra.mxu0 %v461
        %v607 = vpop.f32.mrf.mxu0
        %v608 = vadd.f32 0.0, %v607
        %v609 = vpop.f32.mrf.mxu0
        %610 = vmatprep.mubr.f32.mxu0 0.0
        %611 = vmatmul.mubr.f32.gmra.mxu0 %v462
        %v612 = vpop.f32.mrf.mxu0
        %v613 = vadd.f32 0.0, %v612
        %v614 = vpop.f32.mrf.mxu0
        %615 = vmatprep.mubr.f32.mxu0 0.0
        %616 = vmatmul.mubr.f32.gmra.mxu0 %v463
        %v617 = vpop.f32.mrf.mxu0
        %v618 = vadd.f32 0.0, %v617
        %v619 = vpop.f32.mrf.mxu0
        %620 = vmatprep.mubr.f32.mxu0 0.0
        %621 = vmatmul.mubr.f32.gmra.mxu0 %v464
        %v622 = vpop.f32.mrf.mxu0
        %v623 = vadd.f32 0.0, %v622
        %v624 = vpop.f32.mrf.mxu0
        %625 = vdwg.mxu0
        %v626 = vld [vmem:[#allocation10] sm:$0xff]
        %v627 = vld [vmem:[#allocation10 + $0x8] sm:$0xff]
        %v628 = vld [vmem:[#allocation10 + $0x10] sm:$0xff]
        %v629 = vld [vmem:[#allocation10 + $0x18] sm:$0xff]
        %v630 = vld [vmem:[#allocation10 + $0x20] sm:$0xff]
        %v631 = vld [vmem:[#allocation10 + $0x28] sm:$0xff]
        %v632 = vld [vmem:[#allocation10 + $0x30] sm:$0xff]
        %v633 = vld [vmem:[#allocation10 + $0x38] sm:$0xff]
        %v634 = vld [vmem:[#allocation10 + $0x40] sm:$0xff]
        %v635 = vld [vmem:[#allocation10 + $0x48] sm:$0xff]
        %v636 = vld [vmem:[#allocation10 + $0x50] sm:$0xff]
        %v637 = vld [vmem:[#allocation10 + $0x58] sm:$0xff]
        %v638 = vld [vmem:[#allocation10 + $0x60] sm:$0xff]
        %v639 = vld [vmem:[#allocation10 + $0x68] sm:$0xff]
        %v640 = vld [vmem:[#allocation10 + $0x70] sm:$0xff]
        %v641 = vld [vmem:[#allocation10 + $0x78] sm:$0xff]
        %642 = vmatprep.subr.mxu0 0.0
        %643 = vmatpush1.msra.mxu0 %v641
        %644 = vmatprep.subr.mxu0 0.0
        %645 = vmatpush1.msra.mxu0 %v640
        %646 = vmatprep.subr.mxu0 0.0
        %647 = vmatpush1.msra.mxu0 %v639
        %648 = vmatprep.subr.mxu0 0.0
        %649 = vmatpush1.msra.mxu0 %v638
        %650 = vmatprep.subr.mxu0 0.0
        %651 = vmatpush1.msra.mxu0 %v637
        %652 = vmatprep.subr.mxu0 0.0
        %653 = vmatpush1.msra.mxu0 %v636
        %654 = vmatprep.subr.mxu0 0.0
        %655 = vmatpush1.msra.mxu0 %v635
        %656 = vmatprep.subr.mxu0 0.0
        %657 = vmatpush1.msra.mxu0 %v634
        %658 = vmatprep.subr.mxu0 0.0
        %659 = vmatpush1.msra.mxu0 %v633
        %660 = vmatprep.subr.mxu0 0.0
        %661 = vmatpush1.msra.mxu0 %v632
        %662 = vmatprep.subr.mxu0 0.0
        %663 = vmatpush1.msra.mxu0 %v631
        %664 = vmatprep.subr.mxu0 0.0
        %665 = vmatpush1.msra.mxu0 %v630
        %666 = vmatprep.subr.mxu0 0.0
        %667 = vmatpush1.msra.mxu0 %v629
        %668 = vmatprep.subr.mxu0 0.0
        %669 = vmatpush1.msra.mxu0 %v628
        %670 = vmatprep.subr.mxu0 0.0
        %671 = vmatpush1.msra.mxu0 %v627
        %672 = vmatprep.subr.mxu0 0.0
        %673 = vmatpush1.msra.mxu0 %v626
        %674 = vmatprep.subr.mxu0 0.0
        %675 = vmatpush2.msra.mxu0 0.0
        %676 = vmatprep.subr.mxu0 0.0
        %677 = vmatpush2.msra.mxu0 0.0
        %678 = vmatprep.subr.mxu0 0.0
        %679 = vmatpush2.msra.mxu0 0.0
        %680 = vmatprep.subr.mxu0 0.0
        %681 = vmatpush2.msra.mxu0 0.0
        %682 = vmatprep.subr.mxu0 0.0
        %683 = vmatpush2.msra.mxu0 0.0
        %684 = vmatprep.subr.mxu0 0.0
        %685 = vmatpush2.msra.mxu0 0.0
        %686 = vmatprep.subr.mxu0 0.0
        %687 = vmatpush2.msra.mxu0 0.0
        %688 = vmatprep.subr.mxu0 0.0
        %689 = vmatpush2.msra.mxu0 0.0
        %690 = vmatprep.subr.mxu0 0.0
        %691 = vmatpush2.msra.mxu0 0.0
        %692 = vmatprep.subr.mxu0 0.0
        %693 = vmatpush2.msra.mxu0 0.0
        %694 = vmatprep.subr.mxu0 0.0
        %695 = vmatpush2.msra.mxu0 0.0
        %696 = vmatprep.subr.mxu0 0.0
        %697 = vmatpush2.msra.mxu0 0.0
        %698 = vmatprep.subr.mxu0 0.0
        %699 = vmatpush2.msra.mxu0 0.0
        %700 = vmatprep.subr.mxu0 0.0
        %701 = vmatpush2.msra.mxu0 0.0
        %702 = vmatprep.subr.mxu0 0.0
        %703 = vmatpush2.msra.mxu0 0.0
        %704 = vmatprep.subr.mxu0 0.0
        %705 = vmatpush2.msra.mxu0 0.0
        %706 = vmatprep.mubr.f32.mxu0 0.0
        %707 = vmatmul.mubr.f32.gmra.mxu0 %v449
        %v708 = vpop.f32.mrf.mxu0
        %v709 = vadd.f32 0.0, %v708
        %v710 = vpop.f32.mrf.mxu0
        %711 = vmatprep.mubr.f32.mxu0 0.0
        %712 = vmatmul.mubr.f32.gmra.mxu0 %v450
        %v713 = vpop.f32.mrf.mxu0
        %v714 = vadd.f32 0.0, %v713
        %v715 = vpop.f32.mrf.mxu0
        %716 = vmatprep.mubr.f32.mxu0 0.0
        %717 = vmatmul.mubr.f32.gmra.mxu0 %v451
        %v718 = vpop.f32.mrf.mxu0
        %v719 = vadd.f32 0.0, %v718
        %v720 = vpop.f32.mrf.mxu0
        %721 = vmatprep.mubr.f32.mxu0 0.0
        %722 = vmatmul.mubr.f32.gmra.mxu0 %v452
        %v723 = vpop.f32.mrf.mxu0
        %v724 = vadd.f32 0.0, %v723
        %v725 = vpop.f32.mrf.mxu0
        %726 = vmatprep.mubr.f32.mxu0 0.0
        %727 = vmatmul.mubr.f32.gmra.mxu0 %v453
        %v728 = vpop.f32.mrf.mxu0
        %v729 = vadd.f32 0.0, %v728
        %v730 = vpop.f32.mrf.mxu0
        %731 = vmatprep.mubr.f32.mxu0 0.0
        %732 = vmatmul.mubr.f32.gmra.mxu0 %v454
        %v733 = vpop.f32.mrf.mxu0
        %v734 = vadd.f32 0.0, %v733
        %v735 = vpop.f32.mrf.mxu0
        %736 = vmatprep.mubr.f32.mxu0 0.0
        %737 = vmatmul.mubr.f32.gmra.mxu0 %v455
        %v738 = vpop.f32.mrf.mxu0
        %v739 = vadd.f32 0.0, %v738
        %v740 = vpop.f32.mrf.mxu0
        %741 = vmatprep.mubr.f32.mxu0 0.0
        %742 = vmatmul.mubr.f32.gmra.mxu0 %v456
        %v743 = vpop.f32.mrf.mxu0
        %v744 = vadd.f32 0.0, %v743
        %v745 = vpop.f32.mrf.mxu0
        %746 = vmatprep.mubr.f32.mxu0 0.0
        %747 = vmatmul.mubr.f32.gmra.mxu0 %v457
        %v748 = vpop.f32.mrf.mxu0
        %v749 = vadd.f32 0.0, %v748
        %v750 = vpop.f32.mrf.mxu0
        %751 = vmatprep.mubr.f32.mxu0 0.0
        %752 = vmatmul.mubr.f32.gmra.mxu0 %v458
        %v753 = vpop.f32.mrf.mxu0
        %v754 = vadd.f32 0.0, %v753
        %v755 = vpop.f32.mrf.mxu0
        %756 = vmatprep.mubr.f32.mxu0 0.0
        %757 = vmatmul.mubr.f32.gmra.mxu0 %v459
        %v758 = vpop.f32.mrf.mxu0
        %v759 = vadd.f32 0.0, %v758
        %v760 = vpop.f32.mrf.mxu0
        %761 = vmatprep.mubr.f32.mxu0 0.0
        %762 = vmatmul.mubr.f32.gmra.mxu0 %v460
        %v763 = vpop.f32.mrf.mxu0
        %v764 = vadd.f32 0.0, %v763
        %v765 = vpop.f32.mrf.mxu0
        %766 = vmatprep.mubr.f32.mxu0 0.0
        %767 = vmatmul.mubr.f32.gmra.mxu0 %v461
        %v768 = vpop.f32.mrf.mxu0
        %v769 = vadd.f32 0.0, %v768
        %v770 = vpop.f32.mrf.mxu0
        %771 = vmatprep.mubr.f32.mxu0 0.0
        %772 = vmatmul.mubr.f32.gmra.mxu0 %v462
        %v773 = vpop.f32.mrf.mxu0
        %v774 = vadd.f32 0.0, %v773
        %v775 = vpop.f32.mrf.mxu0
        %776 = vmatprep.mubr.f32.mxu0 0.0
        %777 = vmatmul.mubr.f32.gmra.mxu0 %v463
        %v778 = vpop.f32.mrf.mxu0
        %v779 = vadd.f32 0.0, %v778
        %v780 = vpop.f32.mrf.mxu0
        %781 = vmatprep.mubr.f32.mxu0 0.0
        %782 = vmatmul.mubr.f32.gmra.mxu0 %v464
        %v783 = vpop.f32.mrf.mxu0
        %v784 = vadd.f32 0.0, %v783
        %v785 = vpop.f32.mrf.mxu0
        %786 = vdwg.mxu0
        %v787 = vld [vmem:[#allocation11] sm:$0xff]
        %v788 = vld [vmem:[#allocation11 + $0x8] sm:$0xff]
        %v789 = vld [vmem:[#allocation11 + $0x10] sm:$0xff]
        %v790 = vld [vmem:[#allocation11 + $0x18] sm:$0xff]
        %v791 = vld [vmem:[#allocation11 + $0x20] sm:$0xff]
        %v792 = vld [vmem:[#allocation11 + $0x28] sm:$0xff]
        %v793 = vld [vmem:[#allocation11 + $0x30] sm:$0xff]
        %v794 = vld [vmem:[#allocation11 + $0x38] sm:$0xff]
        %v795 = vld [vmem:[#allocation11 + $0x40] sm:$0xff]
        %v796 = vld [vmem:[#allocation11 + $0x48] sm:$0xff]
        %v797 = vld [vmem:[#allocation11 + $0x50] sm:$0xff]
        %v798 = vld [vmem:[#allocation11 + $0x58] sm:$0xff]
        %v799 = vld [vmem:[#allocation11 + $0x60] sm:$0xff]
        %v800 = vld [vmem:[#allocation11 + $0x68] sm:$0xff]
        %v801 = vld [vmem:[#allocation11 + $0x70] sm:$0xff]
        %v802 = vld [vmem:[#allocation11 + $0x78] sm:$0xff]
        %803 = vmatprep.subr.mxu0 0.0
        %804 = vmatpush1.msra.mxu0 %v802
        %805 = vmatprep.subr.mxu0 0.0
        %806 = vmatpush1.msra.mxu0 %v801
        %807 = vmatprep.subr.mxu0 0.0
        %808 = vmatpush1.msra.mxu0 %v800
        %809 = vmatprep.subr.mxu0 0.0
        %810 = vmatpush1.msra.mxu0 %v799
        %811 = vmatprep.subr.mxu0 0.0
        %812 = vmatpush1.msra.mxu0 %v798
        %813 = vmatprep.subr.mxu0 0.0
        %814 = vmatpush1.msra.mxu0 %v797
        %815 = vmatprep.subr.mxu0 0.0
        %816 = vmatpush1.msra.mxu0 %v796
        %817 = vmatprep.subr.mxu0 0.0
        %818 = vmatpush1.msra.mxu0 %v795
        %819 = vmatprep.subr.mxu0 0.0
        %820 = vmatpush1.msra.mxu0 %v794
        %821 = vmatprep.subr.mxu0 0.0
        %822 = vmatpush1.msra.mxu0 %v793
        %823 = vmatprep.subr.mxu0 0.0
        %824 = vmatpush1.msra.mxu0 %v792
        %825 = vmatprep.subr.mxu0 0.0
        %826 = vmatpush1.msra.mxu0 %v791
        %827 = vmatprep.subr.mxu0 0.0
        %828 = vmatpush1.msra.mxu0 %v790
        %829 = vmatprep.subr.mxu0 0.0
        %830 = vmatpush1.msra.mxu0 %v789
        %831 = vmatprep.subr.mxu0 0.0
        %832 = vmatpush1.msra.mxu0 %v788
        %833 = vmatprep.subr.mxu0 0.0
        %834 = vmatpush1.msra.mxu0 %v787
        %835 = vmatprep.subr.mxu0 0.0
        %836 = vmatpush2.msra.mxu0 0.0
        %837 = vmatprep.subr.mxu0 0.0
        %838 = vmatpush2.msra.mxu0 0.0
        %839 = vmatprep.subr.mxu0 0.0
        %840 = vmatpush2.msra.mxu0 0.0
        %841 = vmatprep.subr.mxu0 0.0
        %842 = vmatpush2.msra.mxu0 0.0
        %843 = vmatprep.subr.mxu0 0.0
        %844 = vmatpush2.msra.mxu0 0.0
        %845 = vmatprep.subr.mxu0 0.0
        %846 = vmatpush2.msra.mxu0 0.0
        %847 = vmatprep.subr.mxu0 0.0
        %848 = vmatpush2.msra.mxu0 0.0
        %849 = vmatprep.subr.mxu0 0.0
        %850 = vmatpush2.msra.mxu0 0.0
        %851 = vmatprep.subr.mxu0 0.0
        %852 = vmatpush2.msra.mxu0 0.0
        %853 = vmatprep.subr.mxu0 0.0
        %854 = vmatpush2.msra.mxu0 0.0
        %855 = vmatprep.subr.mxu0 0.0
        %856 = vmatpush2.msra.mxu0 0.0
        %857 = vmatprep.subr.mxu0 0.0
        %858 = vmatpush2.msra.mxu0 0.0
        %859 = vmatprep.subr.mxu0 0.0
        %860 = vmatpush2.msra.mxu0 0.0
        %861 = vmatprep.subr.mxu0 0.0
        %862 = vmatpush2.msra.mxu0 0.0
        %863 = vmatprep.subr.mxu0 0.0
        %864 = vmatpush2.msra.mxu0 0.0
        %865 = vmatprep.subr.mxu0 0.0
        %866 = vmatpush2.msra.mxu0 0.0
        %867 = vmatprep.mubr.f32.mxu0 0.0
        %868 = vmatmul.mubr.f32.gmra.mxu0 %v449
        %v869 = vpop.f32.mrf.mxu0
        %v870 = vadd.f32 0.0, %v869
        %v871 = vpop.f32.mrf.mxu0
        %872 = vmatprep.mubr.f32.mxu0 0.0
        %873 = vmatmul.mubr.f32.gmra.mxu0 %v450
        %v874 = vpop.f32.mrf.mxu0
        %v875 = vadd.f32 0.0, %v874
        %v876 = vpop.f32.mrf.mxu0
        %877 = vmatprep.mubr.f32.mxu0 0.0
        %878 = vmatmul.mubr.f32.gmra.mxu0 %v451
        %v879 = vpop.f32.mrf.mxu0
        %v880 = vadd.f32 0.0, %v879
        %v881 = vpop.f32.mrf.mxu0
        %882 = vmatprep.mubr.f32.mxu0 0.0
        %883 = vmatmul.mubr.f32.gmra.mxu0 %v452
        %v884 = vpop.f32.mrf.mxu0
        %v885 = vadd.f32 0.0, %v884
        %v886 = vpop.f32.mrf.mxu0
        %887 = vmatprep.mubr.f32.mxu0 0.0
        %888 = vmatmul.mubr.f32.gmra.mxu0 %v453
        %v889 = vpop.f32.mrf.mxu0
        %v890 = vadd.f32 0.0, %v889
        %v891 = vpop.f32.mrf.mxu0
        %892 = vmatprep.mubr.f32.mxu0 0.0
        %893 = vmatmul.mubr.f32.gmra.mxu0 %v454
        %v894 = vpop.f32.mrf.mxu0
        %v895 = vadd.f32 0.0, %v894
        %v896 = vpop.f32.mrf.mxu0
        %897 = vmatprep.mubr.f32.mxu0 0.0
        %898 = vmatmul.mubr.f32.gmra.mxu0 %v455
        %v899 = vpop.f32.mrf.mxu0
        %v900 = vadd.f32 0.0, %v899
        %v901 = vpop.f32.mrf.mxu0
        %902 = vmatprep.mubr.f32.mxu0 0.0
        %903 = vmatmul.mubr.f32.gmra.mxu0 %v456
        %v904 = vpop.f32.mrf.mxu0
        %v905 = vadd.f32 0.0, %v904
        %v906 = vpop.f32.mrf.mxu0
        %907 = vmatprep.mubr.f32.mxu0 0.0
        %908 = vmatmul.mubr.f32.gmra.mxu0 %v457
        %v909 = vpop.f32.mrf.mxu0
        %v910 = vadd.f32 0.0, %v909
        %v911 = vpop.f32.mrf.mxu0
        %912 = vmatprep.mubr.f32.mxu0 0.0
        %913 = vmatmul.mubr.f32.gmra.mxu0 %v458
        %v914 = vpop.f32.mrf.mxu0
        %v915 = vadd.f32 0.0, %v914
        %v916 = vpop.f32.mrf.mxu0
        %917 = vmatprep.mubr.f32.mxu0 0.0
        %918 = vmatmul.mubr.f32.gmra.mxu0 %v459
        %v919 = vpop.f32.mrf.mxu0
        %v920 = vadd.f32 0.0, %v919
        %v921 = vpop.f32.mrf.mxu0
        %922 = vmatprep.mubr.f32.mxu0 0.0
        %923 = vmatmul.mubr.f32.gmra.mxu0 %v460
        %v924 = vpop.f32.mrf.mxu0
        %v925 = vadd.f32 0.0, %v924
        %v926 = vpop.f32.mrf.mxu0
        %927 = vmatprep.mubr.f32.mxu0 0.0
        %928 = vmatmul.mubr.f32.gmra.mxu0 %v461
        %v929 = vpop.f32.mrf.mxu0
        %v930 = vadd.f32 0.0, %v929
        %v931 = vpop.f32.mrf.mxu0
        %932 = vmatprep.mubr.f32.mxu0 0.0
        %933 = vmatmul.mubr.f32.gmra.mxu0 %v462
        %v934 = vpop.f32.mrf.mxu0
        %v935 = vadd.f32 0.0, %v934
        %v936 = vpop.f32.mrf.mxu0
        %937 = vmatprep.mubr.f32.mxu0 0.0
        %938 = vmatmul.mubr.f32.gmra.mxu0 %v463
        %v939 = vpop.f32.mrf.mxu0
        %v940 = vadd.f32 0.0, %v939
        %v941 = vpop.f32.mrf.mxu0
        %942 = vmatprep.mubr.f32.mxu0 0.0
        %943 = vmatmul.mubr.f32.gmra.mxu0 %v464
        %v944 = vpop.f32.mrf.mxu0
        %v945 = vadd.f32 0.0, %v944
        %v946 = vpop.f32.mrf.mxu0
        %947 = vdwg.mxu0
        %p948 = scmp.eq.s32.totalorder %s39, 0
        // Predicated region
        $region65: #{tpu_custom_call.1} parent=47 // pred_check
          %p949 = pneg %p948
        $region66: #{tpu_custom_call.1} parent=47 // pred_check_branch
          %951 = sbr.rel (%p949) target = $region68
        $region67: #{tpu_custom_call.1} parent=47 // pred_region
          %952 = vst [vmem:[#allocation2] sm:$0xff] %v548
          %953 = vst [vmem:[#allocation2 + $0x8] sm:$0xff] %v553
          %954 = vst [vmem:[#allocation2 + $0x10] sm:$0xff] %v558
          %955 = vst [vmem:[#allocation2 + $0x18] sm:$0xff] %v563
          %956 = vst [vmem:[#allocation2 + $0x20] sm:$0xff] %v568
          %957 = vst [vmem:[#allocation2 + $0x28] sm:$0xff] %v573
          %958 = vst [vmem:[#allocation2 + $0x30] sm:$0xff] %v578
          %959 = vst [vmem:[#allocation2 + $0x38] sm:$0xff] %v583
          %960 = vst [vmem:[#allocation2 + $0x40] sm:$0xff] %v588
          %961 = vst [vmem:[#allocation2 + $0x48] sm:$0xff] %v593
          %962 = vst [vmem:[#allocation2 + $0x50] sm:$0xff] %v598
          %963 = vst [vmem:[#allocation2 + $0x58] sm:$0xff] %v603
          %964 = vst [vmem:[#allocation2 + $0x60] sm:$0xff] %v608
          %965 = vst [vmem:[#allocation2 + $0x68] sm:$0xff] %v613
          %966 = vst [vmem:[#allocation2 + $0x70] sm:$0xff] %v618
          %967 = vst [vmem:[#allocation2 + $0x78] sm:$0xff] %v623
          %968 = vst [vmem:[#allocation3] sm:$0xff] %v709
          %969 = vst [vmem:[#allocation3 + $0x8] sm:$0xff] %v714
          %970 = vst [vmem:[#allocation3 + $0x10] sm:$0xff] %v719
          %971 = vst [vmem:[#allocation3 + $0x18] sm:$0xff] %v724
          %972 = vst [vmem:[#allocation3 + $0x20] sm:$0xff] %v729
          %973 = vst [vmem:[#allocation3 + $0x28] sm:$0xff] %v734
          %974 = vst [vmem:[#allocation3 + $0x30] sm:$0xff] %v739
          %975 = vst [vmem:[#allocation3 + $0x38] sm:$0xff] %v744
          %976 = vst [vmem:[#allocation3 + $0x40] sm:$0xff] %v749
          %977 = vst [vmem:[#allocation3 + $0x48] sm:$0xff] %v754
          %978 = vst [vmem:[#allocation3 + $0x50] sm:$0xff] %v759
          %979 = vst [vmem:[#allocation3 + $0x58] sm:$0xff] %v764
          %980 = vst [vmem:[#allocation3 + $0x60] sm:$0xff] %v769
          %981 = vst [vmem:[#allocation3 + $0x68] sm:$0xff] %v774
          %982 = vst [vmem:[#allocation3 + $0x70] sm:$0xff] %v779
          %983 = vst [vmem:[#allocation3 + $0x78] sm:$0xff] %v784
          %984 = vst [vmem:[#allocation4] sm:$0xff] %v870
          %985 = vst [vmem:[#allocation4 + $0x8] sm:$0xff] %v875
          %986 = vst [vmem:[#allocation4 + $0x10] sm:$0xff] %v880
          %987 = vst [vmem:[#allocation4 + $0x18] sm:$0xff] %v885
          %988 = vst [vmem:[#allocation4 + $0x20] sm:$0xff] %v890
          %989 = vst [vmem:[#allocation4 + $0x28] sm:$0xff] %v895
          %990 = vst [vmem:[#allocation4 + $0x30] sm:$0xff] %v900
          %991 = vst [vmem:[#allocation4 + $0x38] sm:$0xff] %v905
          %992 = vst [vmem:[#allocation4 + $0x40] sm:$0xff] %v910
          %993 = vst [vmem:[#allocation4 + $0x48] sm:$0xff] %v915
          %994 = vst [vmem:[#allocation4 + $0x50] sm:$0xff] %v920
          %995 = vst [vmem:[#allocation4 + $0x58] sm:$0xff] %v925
          %996 = vst [vmem:[#allocation4 + $0x60] sm:$0xff] %v930
          %997 = vst [vmem:[#allocation4 + $0x68] sm:$0xff] %v935
          %998 = vst [vmem:[#allocation4 + $0x70] sm:$0xff] %v940
          %999 = vst [vmem:[#allocation4 + $0x78] sm:$0xff] %v945
        $region68: #{tpu_custom_call.1} parent=47 // pred_fallthru
          _
        %p1000 = scmp.gt.s32.totalorder %s39, 0
        // Predicated region
        $region69: #{tpu_custom_call.1} parent=47 // pred_check
          %p1001 = pneg %p1000
        $region70: #{tpu_custom_call.1} parent=47 // pred_check_branch
          %1003 = sbr.rel (%p1001) target = $region72
        $region71: #{tpu_custom_call.1} parent=47 // pred_region
          %v1004 = vld [vmem:[#allocation2] sm:$0xff]
          %v1005 = vld [vmem:[#allocation2 + $0x8] sm:$0xff]
          %v1006 = vld [vmem:[#allocation2 + $0x10] sm:$0xff]
          %v1007 = vld [vmem:[#allocation2 + $0x18] sm:$0xff]
          %v1008 = vld [vmem:[#allocation2 + $0x20] sm:$0xff]
          %v1009 = vld [vmem:[#allocation2 + $0x28] sm:$0xff]
          %v1010 = vld [vmem:[#allocation2 + $0x30] sm:$0xff]
          %v1011 = vld [vmem:[#allocation2 + $0x38] sm:$0xff]
          %v1012 = vld [vmem:[#allocation2 + $0x40] sm:$0xff]
          %v1013 = vld [vmem:[#allocation2 + $0x48] sm:$0xff]
          %v1014 = vld [vmem:[#allocation2 + $0x50] sm:$0xff]
          %v1015 = vld [vmem:[#allocation2 + $0x58] sm:$0xff]
          %v1016 = vld [vmem:[#allocation2 + $0x60] sm:$0xff]
          %v1017 = vld [vmem:[#allocation2 + $0x68] sm:$0xff]
          %v1018 = vld [vmem:[#allocation2 + $0x70] sm:$0xff]
          %v1019 = vld [vmem:[#allocation2 + $0x78] sm:$0xff]
          %v1020 = vadd.f32 %v1004, %v548
          %v1021 = vadd.f32 %v1005, %v553
          %v1022 = vadd.f32 %v1006, %v558
          %v1023 = vadd.f32 %v1007, %v563
          %v1024 = vadd.f32 %v1008, %v568
          %v1025 = vadd.f32 %v1009, %v573
          %v1026 = vadd.f32 %v1010, %v578
          %v1027 = vadd.f32 %v1011, %v583
          %v1028 = vadd.f32 %v1012, %v588
          %v1029 = vadd.f32 %v1013, %v593
          %v1030 = vadd.f32 %v1014, %v598
          %v1031 = vadd.f32 %v1015, %v603
          %v1032 = vadd.f32 %v1016, %v608
          %v1033 = vadd.f32 %v1017, %v613
          %v1034 = vadd.f32 %v1018, %v618
          %v1035 = vadd.f32 %v1019, %v623
          %1036 = vst [vmem:[#allocation2] sm:$0xff] %v1020
          %1037 = vst [vmem:[#allocation2 + $0x8] sm:$0xff] %v1021
          %1038 = vst [vmem:[#allocation2 + $0x10] sm:$0xff] %v1022
          %1039 = vst [vmem:[#allocation2 + $0x18] sm:$0xff] %v1023
          %1040 = vst [vmem:[#allocation2 + $0x20] sm:$0xff] %v1024
          %1041 = vst [vmem:[#allocation2 + $0x28] sm:$0xff] %v1025
          %1042 = vst [vmem:[#allocation2 + $0x30] sm:$0xff] %v1026
          %1043 = vst [vmem:[#allocation2 + $0x38] sm:$0xff] %v1027
          %1044 = vst [vmem:[#allocation2 + $0x40] sm:$0xff] %v1028
          %1045 = vst [vmem:[#allocation2 + $0x48] sm:$0xff] %v1029
          %1046 = vst [vmem:[#allocation2 + $0x50] sm:$0xff] %v1030
          %1047 = vst [vmem:[#allocation2 + $0x58] sm:$0xff] %v1031
          %1048 = vst [vmem:[#allocation2 + $0x60] sm:$0xff] %v1032
          %1049 = vst [vmem:[#allocation2 + $0x68] sm:$0xff] %v1033
          %1050 = vst [vmem:[#allocation2 + $0x70] sm:$0xff] %v1034
          %1051 = vst [vmem:[#allocation2 + $0x78] sm:$0xff] %v1035
          %v1052 = vld [vmem:[#allocation3] sm:$0xff]
          %v1053 = vld [vmem:[#allocation3 + $0x8] sm:$0xff]
          %v1054 = vld [vmem:[#allocation3 + $0x10] sm:$0xff]
          %v1055 = vld [vmem:[#allocation3 + $0x18] sm:$0xff]
          %v1056 = vld [vmem:[#allocation3 + $0x20] sm:$0xff]
          %v1057 = vld [vmem:[#allocation3 + $0x28] sm:$0xff]
          %v1058 = vld [vmem:[#allocation3 + $0x30] sm:$0xff]
          %v1059 = vld [vmem:[#allocation3 + $0x38] sm:$0xff]
          %v1060 = vld [vmem:[#allocation3 + $0x40] sm:$0xff]
          %v1061 = vld [vmem:[#allocation3 + $0x48] sm:$0xff]
          %v1062 = vld [vmem:[#allocation3 + $0x50] sm:$0xff]
          %v1063 = vld [vmem:[#allocation3 + $0x58] sm:$0xff]
          %v1064 = vld [vmem:[#allocation3 + $0x60] sm:$0xff]
          %v1065 = vld [vmem:[#allocation3 + $0x68] sm:$0xff]
          %v1066 = vld [vmem:[#allocation3 + $0x70] sm:$0xff]
          %v1067 = vld [vmem:[#allocation3 + $0x78] sm:$0xff]
          %v1068 = vadd.f32 %v1052, %v709
          %v1069 = vadd.f32 %v1053, %v714
          %v1070 = vadd.f32 %v1054, %v719
          %v1071 = vadd.f32 %v1055, %v724
          %v1072 = vadd.f32 %v1056, %v729
          %v1073 = vadd.f32 %v1057, %v734
          %v1074 = vadd.f32 %v1058, %v739
          %v1075 = vadd.f32 %v1059, %v744
          %v1076 = vadd.f32 %v1060, %v749
          %v1077 = vadd.f32 %v1061, %v754
          %v1078 = vadd.f32 %v1062, %v759
          %v1079 = vadd.f32 %v1063, %v764
          %v1080 = vadd.f32 %v1064, %v769
          %v1081 = vadd.f32 %v1065, %v774
          %v1082 = vadd.f32 %v1066, %v779
          %v1083 = vadd.f32 %v1067, %v784
          %1084 = vst [vmem:[#allocation3] sm:$0xff] %v1068
          %1085 = vst [vmem:[#allocation3 + $0x8] sm:$0xff] %v1069
          %1086 = vst [vmem:[#allocation3 + $0x10] sm:$0xff] %v1070
          %1087 = vst [vmem:[#allocation3 + $0x18] sm:$0xff] %v1071
          %1088 = vst [vmem:[#allocation3 + $0x20] sm:$0xff] %v1072
          %1089 = vst [vmem:[#allocation3 + $0x28] sm:$0xff] %v1073
          %1090 = vst [vmem:[#allocation3 + $0x30] sm:$0xff] %v1074
          %1091 = vst [vmem:[#allocation3 + $0x38] sm:$0xff] %v1075
          %1092 = vst [vmem:[#allocation3 + $0x40] sm:$0xff] %v1076
          %1093 = vst [vmem:[#allocation3 + $0x48] sm:$0xff] %v1077
          %1094 = vst [vmem:[#allocation3 + $0x50] sm:$0xff] %v1078
          %1095 = vst [vmem:[#allocation3 + $0x58] sm:$0xff] %v1079
          %1096 = vst [vmem:[#allocation3 + $0x60] sm:$0xff] %v1080
          %1097 = vst [vmem:[#allocation3 + $0x68] sm:$0xff] %v1081
          %1098 = vst [vmem:[#allocation3 + $0x70] sm:$0xff] %v1082
          %1099 = vst [vmem:[#allocation3 + $0x78] sm:$0xff] %v1083
          %v1100 = vld [vmem:[#allocation4] sm:$0xff]
          %v1101 = vld [vmem:[#allocation4 + $0x8] sm:$0xff]
          %v1102 = vld [vmem:[#allocation4 + $0x10] sm:$0xff]
          %v1103 = vld [vmem:[#allocation4 + $0x18] sm:$0xff]
          %v1104 = vld [vmem:[#allocation4 + $0x20] sm:$0xff]
          %v1105 = vld [vmem:[#allocation4 + $0x28] sm:$0xff]
          %v1106 = vld [vmem:[#allocation4 + $0x30] sm:$0xff]
          %v1107 = vld [vmem:[#allocation4 + $0x38] sm:$0xff]
          %v1108 = vld [vmem:[#allocation4 + $0x40] sm:$0xff]
          %v1109 = vld [vmem:[#allocation4 + $0x48] sm:$0xff]
          %v1110 = vld [vmem:[#allocation4 + $0x50] sm:$0xff]
          %v1111 = vld [vmem:[#allocation4 + $0x58] sm:$0xff]
          %v1112 = vld [vmem:[#allocation4 + $0x60] sm:$0xff]
          %v1113 = vld [vmem:[#allocation4 + $0x68] sm:$0xff]
          %v1114 = vld [vmem:[#allocation4 + $0x70] sm:$0xff]
          %v1115 = vld [vmem:[#allocation4 + $0x78] sm:$0xff]
          %v1116 = vadd.f32 %v1100, %v870
          %v1117 = vadd.f32 %v1101, %v875
          %v1118 = vadd.f32 %v1102, %v880
          %v1119 = vadd.f32 %v1103, %v885
          %v1120 = vadd.f32 %v1104, %v890
          %v1121 = vadd.f32 %v1105, %v895
          %v1122 = vadd.f32 %v1106, %v900
          %v1123 = vadd.f32 %v1107, %v905
          %v1124 = vadd.f32 %v1108, %v910
          %v1125 = vadd.f32 %v1109, %v915
          %v1126 = vadd.f32 %v1110, %v920
          %v1127 = vadd.f32 %v1111, %v925
          %v1128 = vadd.f32 %v1112, %v930
          %v1129 = vadd.f32 %v1113, %v935
          %v1130 = vadd.f32 %v1114, %v940
          %v1131 = vadd.f32 %v1115, %v945
          %1132 = vst [vmem:[#allocation4] sm:$0xff] %v1116
          %1133 = vst [vmem:[#allocation4 + $0x8] sm:$0xff] %v1117
          %1134 = vst [vmem:[#allocation4 + $0x10] sm:$0xff] %v1118
          %1135 = vst [vmem:[#allocation4 + $0x18] sm:$0xff] %v1119
          %1136 = vst [vmem:[#allocation4 + $0x20] sm:$0xff] %v1120
          %1137 = vst [vmem:[#allocation4 + $0x28] sm:$0xff] %v1121
          %1138 = vst [vmem:[#allocation4 + $0x30] sm:$0xff] %v1122
          %1139 = vst [vmem:[#allocation4 + $0x38] sm:$0xff] %v1123
          %1140 = vst [vmem:[#allocation4 + $0x40] sm:$0xff] %v1124
          %1141 = vst [vmem:[#allocation4 + $0x48] sm:$0xff] %v1125
          %1142 = vst [vmem:[#allocation4 + $0x50] sm:$0xff] %v1126
          %1143 = vst [vmem:[#allocation4 + $0x58] sm:$0xff] %v1127
          %1144 = vst [vmem:[#allocation4 + $0x60] sm:$0xff] %v1128
          %1145 = vst [vmem:[#allocation4 + $0x68] sm:$0xff] %v1129
          %1146 = vst [vmem:[#allocation4 + $0x70] sm:$0xff] %v1130
          %1147 = vst [vmem:[#allocation4 + $0x78] sm:$0xff] %v1131
        $region72: #{tpu_custom_call.1} parent=47 // pred_fallthru
          _
        // Predicated region
        $region73: #{tpu_custom_call.1} parent=47 // pred_check
          %p1148 = pneg %p948
        $region74: #{tpu_custom_call.1} parent=47 // pred_check_branch
          %1150 = sbr.rel (%p1148) target = $region76
        $region75: #{tpu_custom_call.1} parent=47 // pred_region
          %v1151 = vld [vmem:[#allocation2] sm:$0xff]
          %v1152 = vld [vmem:[#allocation2 + $0x8] sm:$0xff]
          %v1153 = vld [vmem:[#allocation2 + $0x10] sm:$0xff]
          %v1154 = vld [vmem:[#allocation2 + $0x18] sm:$0xff]
          %v1155 = vld [vmem:[#allocation2 + $0x20] sm:$0xff]
          %v1156 = vld [vmem:[#allocation2 + $0x28] sm:$0xff]
          %v1157 = vld [vmem:[#allocation2 + $0x30] sm:$0xff]
          %v1158 = vld [vmem:[#allocation2 + $0x38] sm:$0xff]
          %v1159 = vld [vmem:[#allocation2 + $0x40] sm:$0xff]
          %v1160 = vld [vmem:[#allocation2 + $0x48] sm:$0xff]
          %v1161 = vld [vmem:[#allocation2 + $0x50] sm:$0xff]
          %v1162 = vld [vmem:[#allocation2 + $0x58] sm:$0xff]
          %v1163 = vld [vmem:[#allocation2 + $0x60] sm:$0xff]
          %v1164 = vld [vmem:[#allocation2 + $0x68] sm:$0xff]
          %v1165 = vld [vmem:[#allocation2 + $0x70] sm:$0xff]
          %v1166 = vld [vmem:[#allocation2 + $0x78] sm:$0xff]
          %v1167 = vld [vmem:[%s2] sm:$0x1]
          %v1169 = vlaneseq
          %v1170 = vshrl.u32 %v1169, 7
          %v1171 = vsub.s32 0, %v1170
          %v1172 = vrot.slane %v1167, %v1171
          %v1174 = vadd.f32 %v1151, %v1172
          %v1175 = vadd.f32 %v1152, %v1172
          %v1176 = vadd.f32 %v1153, %v1172
          %v1177 = vadd.f32 %v1154, %v1172
          %v1178 = vadd.f32 %v1155, %v1172
          %v1179 = vadd.f32 %v1156, %v1172
          %v1180 = vadd.f32 %v1157, %v1172
          %v1181 = vadd.f32 %v1158, %v1172
          %v1182 = vadd.f32 %v1159, %v1172
          %v1183 = vadd.f32 %v1160, %v1172
          %v1184 = vadd.f32 %v1161, %v1172
          %v1185 = vadd.f32 %v1162, %v1172
          %v1186 = vadd.f32 %v1163, %v1172
          %v1187 = vadd.f32 %v1164, %v1172
          %v1188 = vadd.f32 %v1165, %v1172
          %v1189 = vadd.f32 %v1166, %v1172
          %v1190 = vmul.f32 %v1174, 0.17677669
          %v1191 = vmul.f32 %v1175, 0.17677669
          %v1192 = vmul.f32 %v1176, 0.17677669
          %v1193 = vmul.f32 %v1177, 0.17677669
          %v1194 = vmul.f32 %v1178, 0.17677669
          %v1195 = vmul.f32 %v1179, 0.17677669
          %v1196 = vmul.f32 %v1180, 0.17677669
          %v1197 = vmul.f32 %v1181, 0.17677669
          %v1198 = vmul.f32 %v1182, 0.17677669
          %v1199 = vmul.f32 %v1183, 0.17677669
          %v1200 = vmul.f32 %v1184, 0.17677669
          %v1201 = vmul.f32 %v1185, 0.17677669
          %v1202 = vmul.f32 %v1186, 0.17677669
          %v1203 = vmul.f32 %v1187, 0.17677669
          %v1204 = vmul.f32 %v1188, 0.17677669
          %v1205 = vmul.f32 %v1189, 0.17677669
          %1206 = vst [vmem:[%s430] sm:$0xff] %v1190
          %1207 = vst [vmem:[%s430 + $0x8] sm:$0xff] %v1191
          %1208 = vst [vmem:[%s430 + $0x10] sm:$0xff] %v1192
          %1209 = vst [vmem:[%s430 + $0x18] sm:$0xff] %v1193
          %1210 = vst [vmem:[%s430 + $0x20] sm:$0xff] %v1194
          %1211 = vst [vmem:[%s430 + $0x28] sm:$0xff] %v1195
          %1212 = vst [vmem:[%s430 + $0x30] sm:$0xff] %v1196
          %1213 = vst [vmem:[%s430 + $0x38] sm:$0xff] %v1197
          %1214 = vst [vmem:[%s430 + $0x40] sm:$0xff] %v1198
          %1215 = vst [vmem:[%s430 + $0x48] sm:$0xff] %v1199
          %1216 = vst [vmem:[%s430 + $0x50] sm:$0xff] %v1200
          %1217 = vst [vmem:[%s430 + $0x58] sm:$0xff] %v1201
          %1218 = vst [vmem:[%s430 + $0x60] sm:$0xff] %v1202
          %1219 = vst [vmem:[%s430 + $0x68] sm:$0xff] %v1203
          %1220 = vst [vmem:[%s430 + $0x70] sm:$0xff] %v1204
          %1221 = vst [vmem:[%s430 + $0x78] sm:$0xff] %v1205
          %v1222 = vld [vmem:[#allocation3] sm:$0xff]
          %v1223 = vld [vmem:[#allocation3 + $0x8] sm:$0xff]
          %v1224 = vld [vmem:[#allocation3 + $0x10] sm:$0xff]
          %v1225 = vld [vmem:[#allocation3 + $0x18] sm:$0xff]
          %v1226 = vld [vmem:[#allocation3 + $0x20] sm:$0xff]
          %v1227 = vld [vmem:[#allocation3 + $0x28] sm:$0xff]
          %v1228 = vld [vmem:[#allocation3 + $0x30] sm:$0xff]
          %v1229 = vld [vmem:[#allocation3 + $0x38] sm:$0xff]
          %v1230 = vld [vmem:[#allocation3 + $0x40] sm:$0xff]
          %v1231 = vld [vmem:[#allocation3 + $0x48] sm:$0xff]
          %v1232 = vld [vmem:[#allocation3 + $0x50] sm:$0xff]
          %v1233 = vld [vmem:[#allocation3 + $0x58] sm:$0xff]
          %v1234 = vld [vmem:[#allocation3 + $0x60] sm:$0xff]
          %v1235 = vld [vmem:[#allocation3 + $0x68] sm:$0xff]
          %v1236 = vld [vmem:[#allocation3 + $0x70] sm:$0xff]
          %v1237 = vld [vmem:[#allocation3 + $0x78] sm:$0xff]
          %v1238 = vld [vmem:[%s4] sm:$0x1]
          %v1240 = vlaneseq
          %v1241 = vshrl.u32 %v1240, 7
          %v1242 = vsub.s32 0, %v1241
          %v1243 = vrot.slane %v1238, %v1242
          %v1245 = vadd.f32 %v1222, %v1243
          %v1246 = vadd.f32 %v1223, %v1243
          %v1247 = vadd.f32 %v1224, %v1243
          %v1248 = vadd.f32 %v1225, %v1243
          %v1249 = vadd.f32 %v1226, %v1243
          %v1250 = vadd.f32 %v1227, %v1243
          %v1251 = vadd.f32 %v1228, %v1243
          %v1252 = vadd.f32 %v1229, %v1243
          %v1253 = vadd.f32 %v1230, %v1243
          %v1254 = vadd.f32 %v1231, %v1243
          %v1255 = vadd.f32 %v1232, %v1243
          %v1256 = vadd.f32 %v1233, %v1243
          %v1257 = vadd.f32 %v1234, %v1243
          %v1258 = vadd.f32 %v1235, %v1243
          %v1259 = vadd.f32 %v1236, %v1243
          %v1260 = vadd.f32 %v1237, %v1243
          %1261 = vst [vmem:[%s437] sm:$0xff] %v1245
          %1262 = vst [vmem:[%s437 + $0x8] sm:$0xff] %v1246
          %1263 = vst [vmem:[%s437 + $0x10] sm:$0xff] %v1247
          %1264 = vst [vmem:[%s437 + $0x18] sm:$0xff] %v1248
          %1265 = vst [vmem:[%s437 + $0x20] sm:$0xff] %v1249
          %1266 = vst [vmem:[%s437 + $0x28] sm:$0xff] %v1250
          %1267 = vst [vmem:[%s437 + $0x30] sm:$0xff] %v1251
          %1268 = vst [vmem:[%s437 + $0x38] sm:$0xff] %v1252
          %1269 = vst [vmem:[%s437 + $0x40] sm:$0xff] %v1253
          %1270 = vst [vmem:[%s437 + $0x48] sm:$0xff] %v1254
          %1271 = vst [vmem:[%s437 + $0x50] sm:$0xff] %v1255
          %1272 = vst [vmem:[%s437 + $0x58] sm:$0xff] %v1256
          %1273 = vst [vmem:[%s437 + $0x60] sm:$0xff] %v1257
          %1274 = vst [vmem:[%s437 + $0x68] sm:$0xff] %v1258
          %1275 = vst [vmem:[%s437 + $0x70] sm:$0xff] %v1259
          %1276 = vst [vmem:[%s437 + $0x78] sm:$0xff] %v1260
          %v1277 = vld [vmem:[#allocation4] sm:$0xff]
          %v1278 = vld [vmem:[#allocation4 + $0x8] sm:$0xff]
          %v1279 = vld [vmem:[#allocation4 + $0x10] sm:$0xff]
          %v1280 = vld [vmem:[#allocation4 + $0x18] sm:$0xff]
          %v1281 = vld [vmem:[#allocation4 + $0x20] sm:$0xff]
          %v1282 = vld [vmem:[#allocation4 + $0x28] sm:$0xff]
          %v1283 = vld [vmem:[#allocation4 + $0x30] sm:$0xff]
          %v1284 = vld [vmem:[#allocation4 + $0x38] sm:$0xff]
          %v1285 = vld [vmem:[#allocation4 + $0x40] sm:$0xff]
          %v1286 = vld [vmem:[#allocation4 + $0x48] sm:$0xff]
          %v1287 = vld [vmem:[#allocation4 + $0x50] sm:$0xff]
          %v1288 = vld [vmem:[#allocation4 + $0x58] sm:$0xff]
          %v1289 = vld [vmem:[#allocation4 + $0x60] sm:$0xff]
          %v1290 = vld [vmem:[#allocation4 + $0x68] sm:$0xff]
          %v1291 = vld [vmem:[#allocation4 + $0x70] sm:$0xff]
          %v1292 = vld [vmem:[#allocation4 + $0x78] sm:$0xff]
          %v1293 = vld [vmem:[%s6] sm:$0x1]
          %v1295 = vlaneseq
          %v1296 = vshrl.u32 %v1295, 7
          %v1297 = vsub.s32 0, %v1296
          %v1298 = vrot.slane %v1293, %v1297
          %v1300 = vadd.f32 %v1277, %v1298
          %v1301 = vadd.f32 %v1278, %v1298
          %v1302 = vadd.f32 %v1279, %v1298
          %v1303 = vadd.f32 %v1280, %v1298
          %v1304 = vadd.f32 %v1281, %v1298
          %v1305 = vadd.f32 %v1282, %v1298
          %v1306 = vadd.f32 %v1283, %v1298
          %v1307 = vadd.f32 %v1284, %v1298
          %v1308 = vadd.f32 %v1285, %v1298
          %v1309 = vadd.f32 %v1286, %v1298
          %v1310 = vadd.f32 %v1287, %v1298
          %v1311 = vadd.f32 %v1288, %v1298
          %v1312 = vadd.f32 %v1289, %v1298
          %v1313 = vadd.f32 %v1290, %v1298
          %v1314 = vadd.f32 %v1291, %v1298
          %v1315 = vadd.f32 %v1292, %v1298
          %1316 = vst [vmem:[%s444] sm:$0xff] %v1300
          %1317 = vst [vmem:[%s444 + $0x8] sm:$0xff] %v1301
          %1318 = vst [vmem:[%s444 + $0x10] sm:$0xff] %v1302
          %1319 = vst [vmem:[%s444 + $0x18] sm:$0xff] %v1303
          %1320 = vst [vmem:[%s444 + $0x20] sm:$0xff] %v1304
          %1321 = vst [vmem:[%s444 + $0x28] sm:$0xff] %v1305
          %1322 = vst [vmem:[%s444 + $0x30] sm:$0xff] %v1306
          %1323 = vst [vmem:[%s444 + $0x38] sm:$0xff] %v1307
          %1324 = vst [vmem:[%s444 + $0x40] sm:$0xff] %v1308
          %1325 = vst [vmem:[%s444 + $0x48] sm:$0xff] %v1309
          %1326 = vst [vmem:[%s444 + $0x50] sm:$0xff] %v1310
          %1327 = vst [vmem:[%s444 + $0x58] sm:$0xff] %v1311
          %1328 = vst [vmem:[%s444 + $0x60] sm:$0xff] %v1312
          %1329 = vst [vmem:[%s444 + $0x68] sm:$0xff] %v1313
          %1330 = vst [vmem:[%s444 + $0x70] sm:$0xff] %v1314
          %1331 = vst [vmem:[%s444 + $0x78] sm:$0xff] %v1315
        $region76: #{tpu_custom_call.1} parent=47 // pred_fallthru
          _
        %s1332 = sand.u32 %s217, 1
        %s1333 = scalar_lea.sflag [#allocation7], %s1332
        %s1334 = sand.u32 %s217, 1
        %s1335 = smul.addr %s1334, 128
        %s1336 = scalar_lea.vmem [#allocation13], %s1335
        %s1337 = sand.u32 %s32, 1
        %s1338 = scalar_lea.sflag [#allocation15], %s1337
        %s1339 = sand.u32 %s245, 1
        %s1340 = smul.addr %s1339, 128
        %s1341 = scalar_lea.vmem [#allocation14], %s1340
        %s1342 = sand.u32 %s32, 1
        %s1343 = scalar_lea.sflag [#allocation15], %s1342
        %s1344 = sand.u32 %s273, 1
        %s1345 = smul.addr %s1344, 128
        %s1346 = scalar_lea.vmem [#allocation16], %s1345
        // Predicated region
        $region77: #{tpu_custom_call.1} parent=47 // pred_check
          %p1347 = pneg %p227
        $region78: #{tpu_custom_call.1} parent=47 // pred_check_branch
          %1349 = sbr.rel (%p1347) target = $region80
        $region79: #{tpu_custom_call.1} parent=47 // pred_region
          %s1350 = smul.u32 16, %s38
          %s1352 = ssub.s32 2048, 2048
          %1353 = vsyncadd %s1333, %s1352
          %s1354 = smul.addr %s37, 16
          %s1355 = sadd.s32 %s1350, %s1354
          %s1356 = smul.addr %s1355, 128
          %s1357 = scalar_lea.hbm %s7, %s1356
          %s1358 = sshll.u32 %s1336, 4
          %s1359 = int_to_ptr.vmem [resolvable:$true] %s1358
          %1364 = dma.vmem_to_hbm [thread:$0]  %s1359, 2048, %s1357, %s1333, 128, 128, 8
        $region80: #{tpu_custom_call.1} parent=47 // pred_fallthru
          _
        // Predicated region
        $region81: #{tpu_custom_call.1} parent=47 // pred_check
          %p1365 = pneg %p255
        $region82: #{tpu_custom_call.1} parent=47 // pred_check_branch
          %1367 = sbr.rel (%p1365) target = $region84
        $region83: #{tpu_custom_call.1} parent=47 // pred_region
          %s1368 = smul.u32 16, %s38
          %s1370 = ssub.s32 2048, 2048
          %1371 = vsyncadd %s1338, %s1370
          %s1372 = smul.addr %s37, 16
          %s1373 = sadd.s32 %s1368, %s1372
          %s1374 = smul.addr %s1373, 128
          %s1375 = scalar_lea.hbm %s8, %s1374
          %s1376 = sshll.u32 %s1341, 4
          %s1377 = int_to_ptr.vmem [resolvable:$true] %s1376
          %1382 = dma.vmem_to_hbm [thread:$0]  %s1377, 2048, %s1375, %s1338, 128, 128, 8
        $region84: #{tpu_custom_call.1} parent=47 // pred_fallthru
          _
        // Predicated region
        $region85: #{tpu_custom_call.1} parent=47 // pred_check
          %p1383 = pneg %p283
        $region86: #{tpu_custom_call.1} parent=47 // pred_check_branch
          %1385 = sbr.rel (%p1383) target = $region88
        $region87: #{tpu_custom_call.1} parent=47 // pred_region
          %s1386 = smul.u32 16, %s38
          %s1388 = ssub.s32 2048, 2048
          %1389 = vsyncadd %s1343, %s1388
          %s1390 = smul.addr %s37, 16
          %s1391 = sadd.s32 %s1386, %s1390
          %s1392 = smul.addr %s1391, 128
          %s1393 = scalar_lea.hbm %s9, %s1392
          %s1394 = sshll.u32 %s1346, 4
          %s1395 = int_to_ptr.vmem [resolvable:$true] %s1394
          %1400 = dma.vmem_to_hbm [thread:$0]  %s1395, 2048, %s1393, %s1343, 128, 128, 8
        $region88: #{tpu_custom_call.1} parent=47 // pred_fallthru
          _
      $region48: #{tpu_custom_call.1} parent=5 // pred_fallthru
        _
      %p1401 = scmp.le.s32.totalorder 2, %s27
      // Predicated region
      $region89: #{tpu_custom_call.1} parent=5 // pred_check
        %p1402 = pneg %p1401
      $region90: #{tpu_custom_call.1} parent=5 // pred_check_branch
        %1404 = sbr.rel (%p1402) target = $region92
      $region91: #{tpu_custom_call.1} parent=5 // pred_region
        %s1405 = ssub.s32 %s27, 2
        // Predicated region
        $region93: #{tpu_custom_call.1} parent=91 // pred_check
          %p1406 = pneg %p233
        $region94: #{tpu_custom_call.1} parent=91 // pred_check_branch
          %1408 = sbr.rel (%p1406) target = $region96
        $region95: #{tpu_custom_call.1} parent=91 // pred_region
          %s1409 = sand.u32 %s218, 1
          %s1410 = scalar_lea.sflag [#allocation7], %s1409
          %s1411 = sand.u32 %s218, 1
          %s1412 = smul.addr %s1411, 128
          %s1413 = scalar_lea.vmem [#allocation13], %s1412
          %1414 = dma.done %s1410, 2048
        $region96: #{tpu_custom_call.1} parent=91 // pred_fallthru
          _
        // Predicated region
        $region97: #{tpu_custom_call.1} parent=91 // pred_check
          %p1415 = pneg %p261
        $region98: #{tpu_custom_call.1} parent=91 // pred_check_branch
          %1417 = sbr.rel (%p1415) target = $region100
        $region99: #{tpu_custom_call.1} parent=91 // pred_region
          %s1418 = sand.u32 %s33, 1
          %s1419 = scalar_lea.sflag [#allocation15], %s1418
          %s1420 = sand.u32 %s246, 1
          %s1421 = smul.addr %s1420, 128
          %s1422 = scalar_lea.vmem [#allocation14], %s1421
          %1423 = dma.done %s1419, 2048
        $region100: #{tpu_custom_call.1} parent=91 // pred_fallthru
          _
        // Predicated region
        $region101: #{tpu_custom_call.1} parent=91 // pred_check
          %p1424 = pneg %p289
        $region102: #{tpu_custom_call.1} parent=91 // pred_check_branch
          %1426 = sbr.rel (%p1424) target = $region104
        $region103: #{tpu_custom_call.1} parent=91 // pred_region
          %s1427 = sand.u32 %s33, 1
          %s1428 = scalar_lea.sflag [#allocation15], %s1427
          %s1429 = sand.u32 %s274, 1
          %s1430 = smul.addr %s1429, 128
          %s1431 = scalar_lea.vmem [#allocation16], %s1430
          %1432 = dma.done %s1428, 2048
        $region104: #{tpu_custom_call.1} parent=91 // pred_fallthru
          _
      $region92: #{tpu_custom_call.1} parent=5 // pred_fallthru
        _
    $region6: #{tpu_custom_call.1} parent=1 // loop_footer
      %s31 = sadd.s32 1, %s27
    $region7: #{tpu_custom_call.1} parent=1 // loop_footer_branch
      %26 = sbr.rel target = $region3
    $region8: #{tpu_custom_call.1} parent=1 // loop_exit
      _
    %1433 = vsyncpa [#allocation6], 1
    %s1434 = scalar_lea.sflag [#allocation6], 1
    %1435 = vsyncpa %s1434, 1
    %1436 = vsyncpa [#allocation9], 1
    %1437 = vsyncpa [#allocation12], 1
    %1438 = vsyncpa [#allocation7], 1
    %s1439 = scalar_lea.sflag [#allocation7], 1
    %1440 = vsyncpa %s1439, 1
    %1441 = vsyncpa [#allocation15], 1
    %s1442 = scalar_lea.sflag [#allocation15], 1
    %1443 = vsyncpa %s1442, 1

</llo_original>
